<compile_context>
chip_gen: v6e
topology: v6e:2x2x1
jax: 0.10.0
libtpu: 0.0.40
codegen_flags: <defaults>
</compile_context>

<pallas_src>
import functools

import jax
import jax.numpy as jnp
from jax import lax
from jax.experimental import pallas as pl
from jax.experimental.pallas import tpu as pltpu


# -----------------------------------------------------------------------------
# Kernel
# -----------------------------------------------------------------------------
def sysid_rnn_kernel(
    x_ref,       # (T*B, I)     time-major flattened input
    w_ih0_ref,   # (I, H)       layer-0 input weights (transposed)
    w_hh0_ref,   # (H, H)       layer-0 recurrent weights (transposed)
    b0_ref,      # (1, H)       layer-0 combined bias (b_ih + b_hh)
    w_ihr_ref,   # (L-1, H, H)  layers 1..L-1 input weights (transposed)
    w_hhr_ref,   # (L-1, H, H)  layers 1..L-1 recurrent weights (transposed)
    br_ref,      # (L-1, 1, H)  layers 1..L-1 combined bias
    fcw_ref,     # (H, O)       pre-fused FC head weight
    fcb_ref,     # (1, O)       pre-fused FC head bias
    out_ref,     # (B, O)
    *,
    T, B,
):
    f32 = jnp.float32
    H = w_hh0_ref.shape[0]
    L_rest = w_ihr_ref.shape[0]

    def run_layer(xw, w_hh):
        # xw: (T*B, H) pre-projected input (+bias). Only the recurrent matmul
        # remains on the serial chain.
        h = jnp.zeros((B, H), f32)
        outs = []
        for t in range(T):  # T static & small -> unrolled
            h = jnp.tanh(
                xw[t * B:(t + 1) * B, :]
                + jnp.dot(h, w_hh, preferred_element_type=f32)
            )
            outs.append(h)
        return outs, h

    # ---- layer 0: one batched input projection for all T steps -------------
    xw0 = (jnp.dot(x_ref[...], w_ih0_ref[...], preferred_element_type=f32)
           + b0_ref[...])
    outs, h = run_layer(xw0, w_hh0_ref[...])

    # ---- layers 1..L-1: previous layer's sequence stays in registers -------
    for l in range(L_rest):
        seq = jnp.concatenate(outs, axis=0)               # (T*B, H) in vregs
        xwl = (jnp.dot(seq, w_ihr_ref[l], preferred_element_type=f32)
               + br_ref[l])
        outs, h = run_layer(xwl, w_hhr_ref[l])

    # ---- fused FC head on last time step of last layer: single matmul ------
    y = jnp.dot(h, fcw_ref[...], preferred_element_type=f32) + fcb_ref[...]
    out_ref[...] = y.astype(out_ref.dtype)


# -----------------------------------------------------------------------------
# Wrapper
# -----------------------------------------------------------------------------
@jax.jit
def sysid_rnn_forward(x, params):
    B, T, I = x.shape
    H = params["w_hh0"].shape[0]
    O = params["fc3w"].shape[1]

    # Time-major, flattened input: each time step is a contiguous (B, I) row
    # block, so the kernel's per-step slice is a cheap static sublane slice.
    x_tm = jnp.transpose(x, (1, 0, 2)).reshape(T * B, I)

    # Pre-fuse the activation-free 3-layer FC head into one (H, O) matmul.
    hi = lax.Precision.HIGHEST
    fcw = jnp.dot(jnp.dot(params["fc1w"], params["fc2w"], precision=hi),
                  params["fc3w"], precision=hi)
    fcb = (jnp.dot(jnp.dot(params["fc1b"], params["fc2w"], precision=hi)
                   + params["fc2b"],
                   params["fc3w"], precision=hi)
           + params["fc3b"])

    vmem = pl.BlockSpec(memory_space=pltpu.MemorySpace.VMEM)
    args = (
        x_tm,
        params["w_ih0"], params["w_hh0"], params["b0"],
        params["w_ihr"], params["w_hhr"], params["br"],
        fcw, fcb,
    )

    kernel = functools.partial(sysid_rnn_kernel, T=T, B=B)
    return pl.pallas_call(
        kernel,
        out_shape=jax.ShapeDtypeStruct((B, O), jnp.float32),
        in_specs=[vmem] * len(args),
        out_specs=vmem,
    )(*args)


# -----------------------------------------------------------------------------
# Deterministic parameter init (synthetic, mirrors nn.RNN / nn.Linear shapes)
# -----------------------------------------------------------------------------
def init_params(key, input_size, hidden_size, output_size, num_layers):
    H, I, O, L = hidden_size, input_size, output_size, num_layers
    ks = list(jax.random.split(key, 16))

    def u(k, shape, scale=0.1):
        return jax.random.uniform(k, shape, jnp.float32, -scale, scale)

    params = {
        # layer 0 (PyTorch stores (H, I)/(H, H); we pre-transpose)
        "w_ih0": u(ks[0], (I, H)),
        "w_hh0": u(ks[1], (H, H)),
        "b0":    u(ks[2], (1, H)) + u(ks[3], (1, H)),      # b_ih + b_hh
        # layers 1..L-1
        "w_ihr": u(ks[4], (L - 1, H, H)),
        "w_hhr": u(ks[5], (L - 1, H, H)),
        "br":    u(ks[6], (L - 1, 1, H)) + u(ks[7], (L - 1, 1, H)),
        # fc head
        "fc1w": u(ks[8], (H, H // 2)),       "fc1b": u(ks[9], (1, H // 2)),
        "fc2w": u(ks[10], (H // 2, H // 4)), "fc2b": u(ks[11], (1, H // 4)),
        "fc3w": u(ks[12], (H // 4, O)),      "fc3b": u(ks[13], (1, O)),
    }
    return params


# -----------------------------------------------------------------------------
# Pure-JAX reference (unfused, f32-highest precision, for correctness check)
# -----------------------------------------------------------------------------
def sysid_rnn_reference(x, params):
    B, T, _ = x.shape
    H = params["w_hh0"].shape[0]
    L_rest = params["w_ihr"].shape[0]
    hi = lax.Precision.HIGHEST

    def mm(a, b):
        return jnp.dot(a, b, precision=hi)

    seq = x
    # layer 0
    h = jnp.zeros((B, H), jnp.float32)
    outs = []
    for t in range(T):
        h = jnp.tanh(mm(seq[:, t, :], params["w_ih0"])
                     + mm(h, params["w_hh0"]) + params["b0"])
        outs.append(h)
    seq = jnp.stack(outs, axis=1)
    # layers 1..L-1
    for l in range(L_rest):
        h = jnp.zeros((B, H), jnp.float32)
        outs = []
        for t in range(T):
            h = jnp.tanh(mm(seq[:, t, :], params["w_ihr"][l])
                         + mm(h, params["w_hhr"][l]) + params["br"][l])
            outs.append(h)
        seq = jnp.stack(outs, axis=1)
    y = seq[:, -1, :]
    y = mm(y, params["fc1w"]) + params["fc1b"]
    y = mm(y, params["fc2w"]) + params["fc2b"]
    y = mm(y, params["fc3w"]) + params["fc3b"]
    return y


# -----------------------------------------------------------------------------
# Main
# -----------------------------------------------------------------------------
if __name__ == "__main__":
    # small, module-consistent shapes
    batch, seq_len = 2, 8
    input_size, hidden_size, output_size, num_layers = 8, 32, 4, 2

    key = jax.random.PRNGKey(0)
    k_x, k_p = jax.random.split(key)

    x = jax.random.normal(k_x, (batch, seq_len, input_size), jnp.float32)
    params = init_params(k_p, input_size, hidden_size, output_size, num_layers)

    out = sysid_rnn_forward(x, params)
    out = jax.block_until_ready(out)

    ref = sysid_rnn_reference(x, params)
    assert out.shape == (batch, output_size)
    # Tolerance accounts for f32 reassociation from the fused FC head and the
    # hoisted input projection (mathematically identical).
    assert jnp.allclose(out, ref, atol=1e-4, rtol=1e-4), (out, ref)

    print("KERNEL_OK")
</pallas_src>

<mosaic_0001>
module attributes {stable_mosaic.version = 11 : i64} {
  func.func @sysid_rnn_kernel(%arg0: memref<16x8xf32, #tpu.memory_space<vmem>>, %arg1: memref<8x32xf32, #tpu.memory_space<vmem>>, %arg2: memref<32x32xf32, #tpu.memory_space<vmem>>, %arg3: memref<1x32xf32, #tpu.memory_space<vmem>>, %arg4: memref<1x32x32xf32, #tpu.memory_space<vmem>>, %arg5: memref<1x32x32xf32, #tpu.memory_space<vmem>>, %arg6: memref<1x1x32xf32, #tpu.memory_space<vmem>>, %arg7: memref<32x4xf32, #tpu.memory_space<vmem>>, %arg8: memref<1x4xf32, #tpu.memory_space<vmem>>, %arg9: memref<2x4xf32, #tpu.memory_space<vmem>>) attributes {dimension_semantics = [], scalar_prefetch = 0 : i64, scratch_operands = 0 : i64, tpu.core_type = #tpu.core_type<tc>} {
    %c0 = arith.constant 0 : index
    %c0_0 = arith.constant 0 : index
    %0 = vector.load %arg0[%c0, %c0_0] : memref<16x8xf32, #tpu.memory_space<vmem>>, vector<16x8xf32>
    %c0_1 = arith.constant 0 : index
    %c0_2 = arith.constant 0 : index
    %1 = vector.load %arg1[%c0_1, %c0_2] : memref<8x32xf32, #tpu.memory_space<vmem>>, vector<8x32xf32>
    %cst = arith.constant dense<0.000000e+00> : vector<16x32xf32>
    %2 = tpu.matmul %0, %1, %cst {dimension_numbers = #tpu.dot_dimension_numbers<[1], [0], [0], [1], [0, 0, 1, 1], [], []>} : vector<16x8xf32>, vector<8x32xf32>, vector<16x32xf32> -> vector<16x32xf32>
    %c0_3 = arith.constant 0 : index
    %c0_4 = arith.constant 0 : index
    %3 = vector.load %arg3[%c0_3, %c0_4] : memref<1x32xf32, #tpu.memory_space<vmem>>, vector<1x32xf32>
    %4 = vector.broadcast %3 : vector<1x32xf32> to vector<16x32xf32>
    %5 = arith.addf %2, %4 : vector<16x32xf32>
    %c0_5 = arith.constant 0 : index
    %c0_6 = arith.constant 0 : index
    %6 = vector.load %arg2[%c0_5, %c0_6] : memref<32x32xf32, #tpu.memory_space<vmem>>, vector<32x32xf32>
    %cst_7 = arith.constant 0.000000e+00 : f32
    %7 = vector.broadcast %cst_7 : f32 to vector<2x32xf32>
    %8 = vector.extract_strided_slice %5 {offsets = [0, 0], sizes = [2, 32], strides = [1, 1]} : vector<16x32xf32> to vector<2x32xf32>
    %cst_8 = arith.constant dense<0.000000e+00> : vector<2x32xf32>
    %9 = tpu.matmul %7, %6, %cst_8 {dimension_numbers = #tpu.dot_dimension_numbers<[1], [0], [0], [1], [0, 0, 1, 1], [], []>} : vector<2x32xf32>, vector<32x32xf32>, vector<2x32xf32> -> vector<2x32xf32>
    %10 = arith.addf %8, %9 : vector<2x32xf32>
    %11 = math.tanh %10 : vector<2x32xf32>
    %12 = vector.extract_strided_slice %5 {offsets = [2, 0], sizes = [2, 32], strides = [1, 1]} : vector<16x32xf32> to vector<2x32xf32>
    %cst_9 = arith.constant dense<0.000000e+00> : vector<2x32xf32>
    %13 = tpu.matmul %11, %6, %cst_9 {dimension_numbers = #tpu.dot_dimension_numbers<[1], [0], [0], [1], [0, 0, 1, 1], [], []>} : vector<2x32xf32>, vector<32x32xf32>, vector<2x32xf32> -> vector<2x32xf32>
    %14 = arith.addf %12, %13 : vector<2x32xf32>
    %15 = math.tanh %14 : vector<2x32xf32>
    %16 = vector.extract_strided_slice %5 {offsets = [4, 0], sizes = [2, 32], strides = [1, 1]} : vector<16x32xf32> to vector<2x32xf32>
    %cst_10 = arith.constant dense<0.000000e+00> : vector<2x32xf32>
    %17 = tpu.matmul %15, %6, %cst_10 {dimension_numbers = #tpu.dot_dimension_numbers<[1], [0], [0], [1], [0, 0, 1, 1], [], []>} : vector<2x32xf32>, vector<32x32xf32>, vector<2x32xf32> -> vector<2x32xf32>
    %18 = arith.addf %16, %17 : vector<2x32xf32>
    %19 = math.tanh %18 : vector<2x32xf32>
    %20 = vector.extract_strided_slice %5 {offsets = [6, 0], sizes = [2, 32], strides = [1, 1]} : vector<16x32xf32> to vector<2x32xf32>
    %cst_11 = arith.constant dense<0.000000e+00> : vector<2x32xf32>
    %21 = tpu.matmul %19, %6, %cst_11 {dimension_numbers = #tpu.dot_dimension_numbers<[1], [0], [0], [1], [0, 0, 1, 1], [], []>} : vector<2x32xf32>, vector<32x32xf32>, vector<2x32xf32> -> vector<2x32xf32>
    %22 = arith.addf %20, %21 : vector<2x32xf32>
    %23 = math.tanh %22 : vector<2x32xf32>
    %24 = vector.extract_strided_slice %5 {offsets = [8, 0], sizes = [2, 32], strides = [1, 1]} : vector<16x32xf32> to vector<2x32xf32>
    %cst_12 = arith.constant dense<0.000000e+00> : vector<2x32xf32>
    %25 = tpu.matmul %23, %6, %cst_12 {dimension_numbers = #tpu.dot_dimension_numbers<[1], [0], [0], [1], [0, 0, 1, 1], [], []>} : vector<2x32xf32>, vector<32x32xf32>, vector<2x32xf32> -> vector<2x32xf32>
    %26 = arith.addf %24, %25 : vector<2x32xf32>
    %27 = math.tanh %26 : vector<2x32xf32>
    %28 = vector.extract_strided_slice %5 {offsets = [10, 0], sizes = [2, 32], strides = [1, 1]} : vector<16x32xf32> to vector<2x32xf32>
    %cst_13 = arith.constant dense<0.000000e+00> : vector<2x32xf32>
    %29 = tpu.matmul %27, %6, %cst_13 {dimension_numbers = #tpu.dot_dimension_numbers<[1], [0], [0], [1], [0, 0, 1, 1], [], []>} : vector<2x32xf32>, vector<32x32xf32>, vector<2x32xf32> -> vector<2x32xf32>
    %30 = arith.addf %28, %29 : vector<2x32xf32>
    %31 = math.tanh %30 : vector<2x32xf32>
    %32 = vector.extract_strided_slice %5 {offsets = [12, 0], sizes = [2, 32], strides = [1, 1]} : vector<16x32xf32> to vector<2x32xf32>
    %cst_14 = arith.constant dense<0.000000e+00> : vector<2x32xf32>
    %33 = tpu.matmul %31, %6, %cst_14 {dimension_numbers = #tpu.dot_dimension_numbers<[1], [0], [0], [1], [0, 0, 1, 1], [], []>} : vector<2x32xf32>, vector<32x32xf32>, vector<2x32xf32> -> vector<2x32xf32>
    %34 = arith.addf %32, %33 : vector<2x32xf32>
    %35 = math.tanh %34 : vector<2x32xf32>
    %36 = vector.extract_strided_slice %5 {offsets = [14, 0], sizes = [2, 32], strides = [1, 1]} : vector<16x32xf32> to vector<2x32xf32>
    %cst_15 = arith.constant dense<0.000000e+00> : vector<2x32xf32>
    %37 = tpu.matmul %35, %6, %cst_15 {dimension_numbers = #tpu.dot_dimension_numbers<[1], [0], [0], [1], [0, 0, 1, 1], [], []>} : vector<2x32xf32>, vector<32x32xf32>, vector<2x32xf32> -> vector<2x32xf32>
    %38 = arith.addf %36, %37 : vector<2x32xf32>
    %39 = math.tanh %38 : vector<2x32xf32>
    %40 = tpu.concatenate %11, %15, %19, %23, %27, %31, %35, %39 in 0 : vector<2x32xf32>, vector<2x32xf32>, vector<2x32xf32>, vector<2x32xf32>, vector<2x32xf32>, vector<2x32xf32>, vector<2x32xf32>, vector<2x32xf32> -> vector<16x32xf32>
    %c0_16 = arith.constant 0 : index
    %c0_17 = arith.constant 0 : index
    %c0_18 = arith.constant 0 : index
    %41 = vector.load %arg4[%c0_16, %c0_17, %c0_18] : memref<1x32x32xf32, #tpu.memory_space<vmem>>, vector<1x32x32xf32>
    %42 = vector.shape_cast %41 : vector<1x32x32xf32> to vector<32x32xf32>
    %cst_19 = arith.constant dense<0.000000e+00> : vector<16x32xf32>
    %43 = tpu.matmul %40, %42, %cst_19 {dimension_numbers = #tpu.dot_dimension_numbers<[1], [0], [0], [1], [0, 0, 1, 1], [], []>} : vector<16x32xf32>, vector<32x32xf32>, vector<16x32xf32> -> vector<16x32xf32>
    %c0_20 = arith.constant 0 : index
    %c0_21 = arith.constant 0 : index
    %c0_22 = arith.constant 0 : index
    %44 = vector.load %arg6[%c0_20, %c0_21, %c0_22] : memref<1x1x32xf32, #tpu.memory_space<vmem>>, vector<1x1x32xf32>
    %45 = vector.shape_cast %44 : vector<1x1x32xf32> to vector<1x32xf32>
    %46 = vector.broadcast %45 : vector<1x32xf32> to vector<16x32xf32>
    %47 = arith.addf %43, %46 : vector<16x32xf32>
    %c0_23 = arith.constant 0 : index
    %c0_24 = arith.constant 0 : index
    %c0_25 = arith.constant 0 : index
    %48 = vector.load %arg5[%c0_23, %c0_24, %c0_25] : memref<1x32x32xf32, #tpu.memory_space<vmem>>, vector<1x32x32xf32>
    %49 = vector.shape_cast %48 : vector<1x32x32xf32> to vector<32x32xf32>
    %cst_26 = arith.constant 0.000000e+00 : f32
    %50 = vector.broadcast %cst_26 : f32 to vector<2x32xf32>
    %51 = vector.extract_strided_slice %47 {offsets = [0, 0], sizes = [2, 32], strides = [1, 1]} : vector<16x32xf32> to vector<2x32xf32>
    %cst_27 = arith.constant dense<0.000000e+00> : vector<2x32xf32>
    %52 = tpu.matmul %50, %49, %cst_27 {dimension_numbers = #tpu.dot_dimension_numbers<[1], [0], [0], [1], [0, 0, 1, 1], [], []>} : vector<2x32xf32>, vector<32x32xf32>, vector<2x32xf32> -> vector<2x32xf32>
    %53 = arith.addf %51, %52 : vector<2x32xf32>
    %54 = math.tanh %53 : vector<2x32xf32>
    %55 = vector.extract_strided_slice %47 {offsets = [2, 0], sizes = [2, 32], strides = [1, 1]} : vector<16x32xf32> to vector<2x32xf32>
    %cst_28 = arith.constant dense<0.000000e+00> : vector<2x32xf32>
    %56 = tpu.matmul %54, %49, %cst_28 {dimension_numbers = #tpu.dot_dimension_numbers<[1], [0], [0], [1], [0, 0, 1, 1], [], []>} : vector<2x32xf32>, vector<32x32xf32>, vector<2x32xf32> -> vector<2x32xf32>
    %57 = arith.addf %55, %56 : vector<2x32xf32>
    %58 = math.tanh %57 : vector<2x32xf32>
    %59 = vector.extract_strided_slice %47 {offsets = [4, 0], sizes = [2, 32], strides = [1, 1]} : vector<16x32xf32> to vector<2x32xf32>
    %cst_29 = arith.constant dense<0.000000e+00> : vector<2x32xf32>
    %60 = tpu.matmul %58, %49, %cst_29 {dimension_numbers = #tpu.dot_dimension_numbers<[1], [0], [0], [1], [0, 0, 1, 1], [], []>} : vector<2x32xf32>, vector<32x32xf32>, vector<2x32xf32> -> vector<2x32xf32>
    %61 = arith.addf %59, %60 : vector<2x32xf32>
    %62 = math.tanh %61 : vector<2x32xf32>
    %63 = vector.extract_strided_slice %47 {offsets = [6, 0], sizes = [2, 32], strides = [1, 1]} : vector<16x32xf32> to vector<2x32xf32>
    %cst_30 = arith.constant dense<0.000000e+00> : vector<2x32xf32>
    %64 = tpu.matmul %62, %49, %cst_30 {dimension_numbers = #tpu.dot_dimension_numbers<[1], [0], [0], [1], [0, 0, 1, 1], [], []>} : vector<2x32xf32>, vector<32x32xf32>, vector<2x32xf32> -> vector<2x32xf32>
    %65 = arith.addf %63, %64 : vector<2x32xf32>
    %66 = math.tanh %65 : vector<2x32xf32>
    %67 = vector.extract_strided_slice %47 {offsets = [8, 0], sizes = [2, 32], strides = [1, 1]} : vector<16x32xf32> to vector<2x32xf32>
    %cst_31 = arith.constant dense<0.000000e+00> : vector<2x32xf32>
    %68 = tpu.matmul %66, %49, %cst_31 {dimension_numbers = #tpu.dot_dimension_numbers<[1], [0], [0], [1], [0, 0, 1, 1], [], []>} : vector<2x32xf32>, vector<32x32xf32>, vector<2x32xf32> -> vector<2x32xf32>
    %69 = arith.addf %67, %68 : vector<2x32xf32>
    %70 = math.tanh %69 : vector<2x32xf32>
    %71 = vector.extract_strided_slice %47 {offsets = [10, 0], sizes = [2, 32], strides = [1, 1]} : vector<16x32xf32> to vector<2x32xf32>
    %cst_32 = arith.constant dense<0.000000e+00> : vector<2x32xf32>
    %72 = tpu.matmul %70, %49, %cst_32 {dimension_numbers = #tpu.dot_dimension_numbers<[1], [0], [0], [1], [0, 0, 1, 1], [], []>} : vector<2x32xf32>, vector<32x32xf32>, vector<2x32xf32> -> vector<2x32xf32>
    %73 = arith.addf %71, %72 : vector<2x32xf32>
    %74 = math.tanh %73 : vector<2x32xf32>
    %75 = vector.extract_strided_slice %47 {offsets = [12, 0], sizes = [2, 32], strides = [1, 1]} : vector<16x32xf32> to vector<2x32xf32>
    %cst_33 = arith.constant dense<0.000000e+00> : vector<2x32xf32>
    %76 = tpu.matmul %74, %49, %cst_33 {dimension_numbers = #tpu.dot_dimension_numbers<[1], [0], [0], [1], [0, 0, 1, 1], [], []>} : vector<2x32xf32>, vector<32x32xf32>, vector<2x32xf32> -> vector<2x32xf32>
    %77 = arith.addf %75, %76 : vector<2x32xf32>
    %78 = math.tanh %77 : vector<2x32xf32>
    %79 = vector.extract_strided_slice %47 {offsets = [14, 0], sizes = [2, 32], strides = [1, 1]} : vector<16x32xf32> to vector<2x32xf32>
    %cst_34 = arith.constant dense<0.000000e+00> : vector<2x32xf32>
    %80 = tpu.matmul %78, %49, %cst_34 {dimension_numbers = #tpu.dot_dimension_numbers<[1], [0], [0], [1], [0, 0, 1, 1], [], []>} : vector<2x32xf32>, vector<32x32xf32>, vector<2x32xf32> -> vector<2x32xf32>
    %81 = arith.addf %79, %80 : vector<2x32xf32>
    %82 = math.tanh %81 : vector<2x32xf32>
    %c0_35 = arith.constant 0 : index
    %c0_36 = arith.constant 0 : index
    %83 = vector.load %arg7[%c0_35, %c0_36] : memref<32x4xf32, #tpu.memory_space<vmem>>, vector<32x4xf32>
    %cst_37 = arith.constant dense<0.000000e+00> : vector<2x4xf32>
    %84 = tpu.matmul %82, %83, %cst_37 {dimension_numbers = #tpu.dot_dimension_numbers<[1], [0], [0], [1], [0, 0, 1, 1], [], []>} : vector<2x32xf32>, vector<32x4xf32>, vector<2x4xf32> -> vector<2x4xf32>
    %c0_38 = arith.constant 0 : index
    %c0_39 = arith.constant 0 : index
    %85 = vector.load %arg8[%c0_38, %c0_39] : memref<1x4xf32, #tpu.memory_space<vmem>>, vector<1x4xf32>
    %86 = vector.broadcast %85 : vector<1x4xf32> to vector<2x4xf32>
    %87 = arith.addf %84, %86 : vector<2x4xf32>
    %c0_40 = arith.constant 0 : index
    %c0_41 = arith.constant 0 : index
    %88 = vector.load %arg9[%c0_40, %c0_41] : memref<2x4xf32, #tpu.memory_space<vmem>>, vector<2x4xf32>
    tpu.vector_store %arg9[%c0_40, %c0_41], %87 {strides = array<i32>} : memref<2x4xf32, #tpu.memory_space<vmem>>, vector<2x4xf32>,
    return
  }
}

</mosaic_0001>

<llo_original>
// kernel: sysid_rnn_forward.1
$region0: #{sysid_rnn_forward.1}
  #allocation0 [shape = 'u32[]', space=smem, size = 0x4, offset = 0x4, fixed_abs, tag = 'smem constant byte address 0x4 - core index']
  #allocation1 [shape = 'u32[144,128]{1,0:T(1,128)}', space=vmem, size = 0x12000, scoped, tag = 'internal scratch']
  %s0 = inlined_call_operand.vmem [shape: f32[16,8], index: 0, kind: input, shape index: {}]
  %s1 = inlined_call_operand.vmem [shape: f32[8,32], index: 1, kind: input, shape index: {}]
  %s2 = inlined_call_operand.vmem [shape: f32[32,32], index: 2, kind: input, shape index: {}]
  %s3 = inlined_call_operand.vmem [shape: f32[1,32], index: 3, kind: input, shape index: {}]
  %s4 = inlined_call_operand.vmem [shape: f32[1,32,32], index: 4, kind: input, shape index: {}]
  %s5 = inlined_call_operand.vmem [shape: f32[1,32,32], index: 5, kind: input, shape index: {}]
  %s6 = inlined_call_operand.vmem [shape: f32[1,1,32], index: 6, kind: input, shape index: {}]
  %s7 = inlined_call_operand.vmem [shape: f32[32,4], index: 7, kind: input, shape index: {}]
  %s8 = inlined_call_operand.vmem [shape: f32[1,4], index: 8, kind: input, shape index: {}]
  %s9 = inlined_call_operand.hbm [shape: f32[2,4], index: 9, kind: output, shape index: {}]
  %s10 = sld [smem:[#allocation0]]
  $region46: #{sysid_rnn_forward.1} parent=0
    _
  %s12 = ssub.s32 1, %s10
  %s13 = scalar_select 0, %s12, %s10
  $region1: #{sysid_rnn_forward.1} parent=0
    #allocation2 [shape = 'u8[1024]{0}', space=vmem, size = 0x400, scoped, tag = 'output window, operand 0, single buffered']
    #allocation3 [shape = 's32[1]{0}', space=sflag, size = 0x4, scoped, tag = 'scoped memory for sysid_rnn_forward.1']
    %14 = vsyncpa [#allocation3], 0
    // Predicated region
    $region2: #{sysid_rnn_forward.1} parent=1 // pred_check
      _
    $region3: #{sysid_rnn_forward.1} parent=1 // pred_check_branch
      %16 = sbr.rel (0) target = $region5
    $region4: #{sysid_rnn_forward.1} parent=1 // pred_region
      _
    $region5: #{sysid_rnn_forward.1} parent=1 // pred_fallthru
      _
    // Predicated region
    $region6: #{sysid_rnn_forward.1} parent=1 // pred_check
      _
    $region7: #{sysid_rnn_forward.1} parent=1 // pred_check_branch
      %18 = sbr.rel (0) target = $region9
    $region8: #{sysid_rnn_forward.1} parent=1 // pred_region
      _
    $region9: #{sysid_rnn_forward.1} parent=1 // pred_fallthru
      _
    // Predicated region
    $region10: #{sysid_rnn_forward.1} parent=1 // pred_check
      _
    $region11: #{sysid_rnn_forward.1} parent=1 // pred_check_branch
      %20 = sbr.rel (0) target = $region13
    $region12: #{sysid_rnn_forward.1} parent=1 // pred_region
      _
    $region13: #{sysid_rnn_forward.1} parent=1 // pred_fallthru
      _
    // Predicated region
    $region14: #{sysid_rnn_forward.1} parent=1 // pred_check
      _
    $region15: #{sysid_rnn_forward.1} parent=1 // pred_check_branch
      %22 = sbr.rel (0) target = $region17
    $region16: #{sysid_rnn_forward.1} parent=1 // pred_region
      _
    $region17: #{sysid_rnn_forward.1} parent=1 // pred_fallthru
      _
    // Predicated region
    $region18: #{sysid_rnn_forward.1} parent=1 // pred_check
      _
    $region19: #{sysid_rnn_forward.1} parent=1 // pred_check_branch
      %24 = sbr.rel (0) target = $region21
    $region20: #{sysid_rnn_forward.1} parent=1 // pred_region
      _
    $region21: #{sysid_rnn_forward.1} parent=1 // pred_fallthru
      _
    // Predicated region
    $region22: #{sysid_rnn_forward.1} parent=1 // pred_check
      _
    $region23: #{sysid_rnn_forward.1} parent=1 // pred_check_branch
      %26 = sbr.rel (0) target = $region25
    $region24: #{sysid_rnn_forward.1} parent=1 // pred_region
      _
    $region25: #{sysid_rnn_forward.1} parent=1 // pred_fallthru
      _
    // Predicated region
    $region26: #{sysid_rnn_forward.1} parent=1 // pred_check
      _
    $region27: #{sysid_rnn_forward.1} parent=1 // pred_check_branch
      %28 = sbr.rel (0) target = $region29
    $region28: #{sysid_rnn_forward.1} parent=1 // pred_region
      _
    $region29: #{sysid_rnn_forward.1} parent=1 // pred_fallthru
      _
    // Predicated region
    $region30: #{sysid_rnn_forward.1} parent=1 // pred_check
      _
    $region31: #{sysid_rnn_forward.1} parent=1 // pred_check_branch
      %30 = sbr.rel (0) target = $region33
    $region32: #{sysid_rnn_forward.1} parent=1 // pred_region
      _
    $region33: #{sysid_rnn_forward.1} parent=1 // pred_fallthru
      _
    // Predicated region
    $region34: #{sysid_rnn_forward.1} parent=1 // pred_check
      _
    $region35: #{sysid_rnn_forward.1} parent=1 // pred_check_branch
      %32 = sbr.rel (0) target = $region37
    $region36: #{sysid_rnn_forward.1} parent=1 // pred_region
      _
    $region37: #{sysid_rnn_forward.1} parent=1 // pred_fallthru
      _
    %v33 = vld [vmem:[%s0] sm:$0xff]
    %v34 = vld [vmem:[%s0 + $0x8] sm:$0xff]
    %v35 = vld [vmem:[%s1] sm:$0xff]
    %v36 = vld [vmem:[%s3] sm:$0x1]
    %v38 = vlaneseq
    %v39 = vshrl.u32 %v38, 7
    %v40 = vsub.s32 0, %v39
    %v41 = vrot.slane %v36, %v40
    %vm43 = vcmask 64512
    %v45 = vsel %vm43, %v33, 0
    %v48 = vsel %vm43, %v34, 0
    %50 = vmatprep.subr.mxu0 0.0
    %51 = vmatpush1.msra.mxu0 0.0
    %52 = vmatprep.subr.mxu0 0.0
    %53 = vmatpush1.msra.mxu0 0.0
    %54 = vmatprep.subr.mxu0 0.0
    %55 = vmatpush1.msra.mxu0 0.0
    %56 = vmatprep.subr.mxu0 0.0
    %57 = vmatpush1.msra.mxu0 0.0
    %58 = vmatprep.subr.mxu0 0.0
    %59 = vmatpush1.msra.mxu0 0.0
    %60 = vmatprep.subr.mxu0 0.0
    %61 = vmatpush1.msra.mxu0 0.0
    %62 = vmatprep.subr.mxu0 0.0
    %63 = vmatpush1.msra.mxu0 0.0
    %64 = vmatprep.subr.mxu0 0.0
    %65 = vmatpush1.msra.mxu0 0.0
    %66 = vmatprep.subr.mxu0 0.0
    %67 = vmatpush1.msra.mxu0 0.0
    %68 = vmatprep.subr.mxu0 0.0
    %69 = vmatpush1.msra.mxu0 0.0
    %70 = vmatprep.subr.mxu0 0.0
    %71 = vmatpush1.msra.mxu0 0.0
    %72 = vmatprep.subr.mxu0 0.0
    %73 = vmatpush1.msra.mxu0 0.0
    %74 = vmatprep.subr.mxu0 0.0
    %75 = vmatpush1.msra.mxu0 0.0
    %76 = vmatprep.subr.mxu0 0.0
    %77 = vmatpush1.msra.mxu0 0.0
    %78 = vmatprep.subr.mxu0 0.0
    %79 = vmatpush1.msra.mxu0 0.0
    %80 = vmatprep.subr.mxu0 0.0
    %81 = vmatpush1.msra.mxu0 %v35
    %82 = vmatprep.subr.mxu0 0.0
    %83 = vmatpush2.msra.mxu0 0.0
    %84 = vmatprep.subr.mxu0 0.0
    %85 = vmatpush2.msra.mxu0 0.0
    %86 = vmatprep.subr.mxu0 0.0
    %87 = vmatpush2.msra.mxu0 0.0
    %88 = vmatprep.subr.mxu0 0.0
    %89 = vmatpush2.msra.mxu0 0.0
    %90 = vmatprep.subr.mxu0 0.0
    %91 = vmatpush2.msra.mxu0 0.0
    %92 = vmatprep.subr.mxu0 0.0
    %93 = vmatpush2.msra.mxu0 0.0
    %94 = vmatprep.subr.mxu0 0.0
    %95 = vmatpush2.msra.mxu0 0.0
    %96 = vmatprep.subr.mxu0 0.0
    %97 = vmatpush2.msra.mxu0 0.0
    %98 = vmatprep.subr.mxu0 0.0
    %99 = vmatpush2.msra.mxu0 0.0
    %100 = vmatprep.subr.mxu0 0.0
    %101 = vmatpush2.msra.mxu0 0.0
    %102 = vmatprep.subr.mxu0 0.0
    %103 = vmatpush2.msra.mxu0 0.0
    %104 = vmatprep.subr.mxu0 0.0
    %105 = vmatpush2.msra.mxu0 0.0
    %106 = vmatprep.subr.mxu0 0.0
    %107 = vmatpush2.msra.mxu0 0.0
    %108 = vmatprep.subr.mxu0 0.0
    %109 = vmatpush2.msra.mxu0 0.0
    %110 = vmatprep.subr.mxu0 0.0
    %111 = vmatpush2.msra.mxu0 0.0
    %112 = vmatprep.subr.mxu0 0.0
    %113 = vmatpush2.msra.mxu0 0.0
    %114 = vmatprep.mubr.f32.mxu0 0.0
    %115 = vmatmul.mubr.f32.gmra.mxu0 %v45
    %v116 = vpop.f32.mrf.mxu0
    %v117 = vadd.f32 %v41, %v116
    %v118 = vpop.f32.mrf.mxu0
    %119 = vmatprep.mubr.f32.mxu0 0.0
    %120 = vmatmul.mubr.f32.gmra.mxu0 %v48
    %v121 = vpop.f32.mrf.mxu0
    %v122 = vadd.f32 %v41, %v121
    %v123 = vpop.f32.mrf.mxu0
    %124 = vdwg.mxu0
    %v125 = vld [vmem:[%s2] sm:$0xff]
    %v126 = vld [vmem:[%s2 + $0x8] sm:$0xff]
    %v127 = vld [vmem:[%s2 + $0x10] sm:$0xff]
    %v128 = vld [vmem:[%s2 + $0x18] sm:$0xff]
    %vm129 = vcmask 261120
    %v131 = vsel %vm129, 0.0, 0
    %133 = vmatprep.subr.mxu0 0.0
    %134 = vmatpush1.msra.mxu0 0.0
    %135 = vmatprep.subr.mxu0 0.0
    %136 = vmatpush1.msra.mxu0 0.0
    %137 = vmatprep.subr.mxu0 0.0
    %138 = vmatpush1.msra.mxu0 0.0
    %139 = vmatprep.subr.mxu0 0.0
    %140 = vmatpush1.msra.mxu0 0.0
    %141 = vmatprep.subr.mxu0 0.0
    %142 = vmatpush1.msra.mxu0 0.0
    %143 = vmatprep.subr.mxu0 0.0
    %144 = vmatpush1.msra.mxu0 0.0
    %145 = vmatprep.subr.mxu0 0.0
    %146 = vmatpush1.msra.mxu0 0.0
    %147 = vmatprep.subr.mxu0 0.0
    %148 = vmatpush1.msra.mxu0 0.0
    %149 = vmatprep.subr.mxu0 0.0
    %150 = vmatpush1.msra.mxu0 0.0
    %151 = vmatprep.subr.mxu0 0.0
    %152 = vmatpush1.msra.mxu0 0.0
    %153 = vmatprep.subr.mxu0 0.0
    %154 = vmatpush1.msra.mxu0 0.0
    %155 = vmatprep.subr.mxu0 0.0
    %156 = vmatpush1.msra.mxu0 0.0
    %157 = vmatprep.subr.mxu0 0.0
    %158 = vmatpush1.msra.mxu0 %v128
    %159 = vmatprep.subr.mxu0 0.0
    %160 = vmatpush1.msra.mxu0 %v127
    %161 = vmatprep.subr.mxu0 0.0
    %162 = vmatpush1.msra.mxu0 %v126
    %163 = vmatprep.subr.mxu0 0.0
    %164 = vmatpush1.msra.mxu0 %v125
    %165 = vmatprep.subr.mxu0 0.0
    %166 = vmatpush2.msra.mxu0 0.0
    %167 = vmatprep.subr.mxu0 0.0
    %168 = vmatpush2.msra.mxu0 0.0
    %169 = vmatprep.subr.mxu0 0.0
    %170 = vmatpush2.msra.mxu0 0.0
    %171 = vmatprep.subr.mxu0 0.0
    %172 = vmatpush2.msra.mxu0 0.0
    %173 = vmatprep.subr.mxu0 0.0
    %174 = vmatpush2.msra.mxu0 0.0
    %175 = vmatprep.subr.mxu0 0.0
    %176 = vmatpush2.msra.mxu0 0.0
    %177 = vmatprep.subr.mxu0 0.0
    %178 = vmatpush2.msra.mxu0 0.0
    %179 = vmatprep.subr.mxu0 0.0
    %180 = vmatpush2.msra.mxu0 0.0
    %181 = vmatprep.subr.mxu0 0.0
    %182 = vmatpush2.msra.mxu0 0.0
    %183 = vmatprep.subr.mxu0 0.0
    %184 = vmatpush2.msra.mxu0 0.0
    %185 = vmatprep.subr.mxu0 0.0
    %186 = vmatpush2.msra.mxu0 0.0
    %187 = vmatprep.subr.mxu0 0.0
    %188 = vmatpush2.msra.mxu0 0.0
    %189 = vmatprep.subr.mxu0 0.0
    %190 = vmatpush2.msra.mxu0 0.0
    %191 = vmatprep.subr.mxu0 0.0
    %192 = vmatpush2.msra.mxu0 0.0
    %193 = vmatprep.subr.mxu0 0.0
    %194 = vmatpush2.msra.mxu0 0.0
    %195 = vmatprep.subr.mxu0 0.0
    %196 = vmatpush2.msra.mxu0 0.0
    %197 = vmatprep.mubr.f32.mxu0 0.0
    %198 = vmatmul.mubr.f32.gmra.mxu0 %v131
    %v199 = vpop.f32.mrf.mxu0
    %v200 = vadd.f32 0.0, %v199
    %v201 = vpop.f32.mrf.mxu0
    %202 = vdwg.mxu0
    %v203 = vadd.f32 %v117, %v200
    %v204 = vtanh.pop %v203
    %v206 = vsel %vm129, %v204, 0
    %208 = vmatprep.subr.mxu0 0.0
    %209 = vmatpush1.msra.mxu0 0.0
    %210 = vmatprep.subr.mxu0 0.0
    %211 = vmatpush1.msra.mxu0 0.0
    %212 = vmatprep.subr.mxu0 0.0
    %213 = vmatpush1.msra.mxu0 0.0
    %214 = vmatprep.subr.mxu0 0.0
    %215 = vmatpush1.msra.mxu0 0.0
    %216 = vmatprep.subr.mxu0 0.0
    %217 = vmatpush1.msra.mxu0 0.0
    %218 = vmatprep.subr.mxu0 0.0
    %219 = vmatpush1.msra.mxu0 0.0
    %220 = vmatprep.subr.mxu0 0.0
    %221 = vmatpush1.msra.mxu0 0.0
    %222 = vmatprep.subr.mxu0 0.0
    %223 = vmatpush1.msra.mxu0 0.0
    %224 = vmatprep.subr.mxu0 0.0
    %225 = vmatpush1.msra.mxu0 0.0
    %226 = vmatprep.subr.mxu0 0.0
    %227 = vmatpush1.msra.mxu0 0.0
    %228 = vmatprep.subr.mxu0 0.0
    %229 = vmatpush1.msra.mxu0 0.0
    %230 = vmatprep.subr.mxu0 0.0
    %231 = vmatpush1.msra.mxu0 0.0
    %232 = vmatprep.subr.mxu0 0.0
    %233 = vmatpush1.msra.mxu0 %v128
    %234 = vmatprep.subr.mxu0 0.0
    %235 = vmatpush1.msra.mxu0 %v127
    %236 = vmatprep.subr.mxu0 0.0
    %237 = vmatpush1.msra.mxu0 %v126
    %238 = vmatprep.subr.mxu0 0.0
    %239 = vmatpush1.msra.mxu0 %v125
    %240 = vmatprep.subr.mxu0 0.0
    %241 = vmatpush2.msra.mxu0 0.0
    %242 = vmatprep.subr.mxu0 0.0
    %243 = vmatpush2.msra.mxu0 0.0
    %244 = vmatprep.subr.mxu0 0.0
    %245 = vmatpush2.msra.mxu0 0.0
    %246 = vmatprep.subr.mxu0 0.0
    %247 = vmatpush2.msra.mxu0 0.0
    %248 = vmatprep.subr.mxu0 0.0
    %249 = vmatpush2.msra.mxu0 0.0
    %250 = vmatprep.subr.mxu0 0.0
    %251 = vmatpush2.msra.mxu0 0.0
    %252 = vmatprep.subr.mxu0 0.0
    %253 = vmatpush2.msra.mxu0 0.0
    %254 = vmatprep.subr.mxu0 0.0
    %255 = vmatpush2.msra.mxu0 0.0
    %256 = vmatprep.subr.mxu0 0.0
    %257 = vmatpush2.msra.mxu0 0.0
    %258 = vmatprep.subr.mxu0 0.0
    %259 = vmatpush2.msra.mxu0 0.0
    %260 = vmatprep.subr.mxu0 0.0
    %261 = vmatpush2.msra.mxu0 0.0
    %262 = vmatprep.subr.mxu0 0.0
    %263 = vmatpush2.msra.mxu0 0.0
    %264 = vmatprep.subr.mxu0 0.0
    %265 = vmatpush2.msra.mxu0 0.0
    %266 = vmatprep.subr.mxu0 0.0
    %267 = vmatpush2.msra.mxu0 0.0
    %268 = vmatprep.subr.mxu0 0.0
    %269 = vmatpush2.msra.mxu0 0.0
    %270 = vmatprep.subr.mxu0 0.0
    %271 = vmatpush2.msra.mxu0 0.0
    %272 = vmatprep.mubr.f32.mxu0 0.0
    %273 = vmatmul.mubr.f32.gmra.mxu0 %v206
    %v274 = vpop.f32.mrf.mxu0
    %v275 = vadd.f32 0.0, %v274
    %v276 = vpop.f32.mrf.mxu0
    %277 = vdwg.mxu0
    %v279 = vrot.slane %v275, 6
    %v281 = vadd.f32 %v117, %v279
    %v282 = vtanh.pop %v281
    %v284 = vrot.slane %v282, 2
    %v285 = vsel %vm129, %v284, 0
    %287 = vmatprep.subr.mxu0 0.0
    %288 = vmatpush1.msra.mxu0 0.0
    %289 = vmatprep.subr.mxu0 0.0
    %290 = vmatpush1.msra.mxu0 0.0
    %291 = vmatprep.subr.mxu0 0.0
    %292 = vmatpush1.msra.mxu0 0.0
    %293 = vmatprep.subr.mxu0 0.0
    %294 = vmatpush1.msra.mxu0 0.0
    %295 = vmatprep.subr.mxu0 0.0
    %296 = vmatpush1.msra.mxu0 0.0
    %297 = vmatprep.subr.mxu0 0.0
    %298 = vmatpush1.msra.mxu0 0.0
    %299 = vmatprep.subr.mxu0 0.0
    %300 = vmatpush1.msra.mxu0 0.0
    %301 = vmatprep.subr.mxu0 0.0
    %302 = vmatpush1.msra.mxu0 0.0
    %303 = vmatprep.subr.mxu0 0.0
    %304 = vmatpush1.msra.mxu0 0.0
    %305 = vmatprep.subr.mxu0 0.0
    %306 = vmatpush1.msra.mxu0 0.0
    %307 = vmatprep.subr.mxu0 0.0
    %308 = vmatpush1.msra.mxu0 0.0
    %309 = vmatprep.subr.mxu0 0.0
    %310 = vmatpush1.msra.mxu0 0.0
    %311 = vmatprep.subr.mxu0 0.0
    %312 = vmatpush1.msra.mxu0 %v128
    %313 = vmatprep.subr.mxu0 0.0
    %314 = vmatpush1.msra.mxu0 %v127
    %315 = vmatprep.subr.mxu0 0.0
    %316 = vmatpush1.msra.mxu0 %v126
    %317 = vmatprep.subr.mxu0 0.0
    %318 = vmatpush1.msra.mxu0 %v125
    %319 = vmatprep.subr.mxu0 0.0
    %320 = vmatpush2.msra.mxu0 0.0
    %321 = vmatprep.subr.mxu0 0.0
    %322 = vmatpush2.msra.mxu0 0.0
    %323 = vmatprep.subr.mxu0 0.0
    %324 = vmatpush2.msra.mxu0 0.0
    %325 = vmatprep.subr.mxu0 0.0
    %326 = vmatpush2.msra.mxu0 0.0
    %327 = vmatprep.subr.mxu0 0.0
    %328 = vmatpush2.msra.mxu0 0.0
    %329 = vmatprep.subr.mxu0 0.0
    %330 = vmatpush2.msra.mxu0 0.0
    %331 = vmatprep.subr.mxu0 0.0
    %332 = vmatpush2.msra.mxu0 0.0
    %333 = vmatprep.subr.mxu0 0.0
    %334 = vmatpush2.msra.mxu0 0.0
    %335 = vmatprep.subr.mxu0 0.0
    %336 = vmatpush2.msra.mxu0 0.0
    %337 = vmatprep.subr.mxu0 0.0
    %338 = vmatpush2.msra.mxu0 0.0
    %339 = vmatprep.subr.mxu0 0.0
    %340 = vmatpush2.msra.mxu0 0.0
    %341 = vmatprep.subr.mxu0 0.0
    %342 = vmatpush2.msra.mxu0 0.0
    %343 = vmatprep.subr.mxu0 0.0
    %344 = vmatpush2.msra.mxu0 0.0
    %345 = vmatprep.subr.mxu0 0.0
    %346 = vmatpush2.msra.mxu0 0.0
    %347 = vmatprep.subr.mxu0 0.0
    %348 = vmatpush2.msra.mxu0 0.0
    %349 = vmatprep.subr.mxu0 0.0
    %350 = vmatpush2.msra.mxu0 0.0
    %351 = vmatprep.mubr.f32.mxu0 0.0
    %352 = vmatmul.mubr.f32.gmra.mxu0 %v285
    %v353 = vpop.f32.mrf.mxu0
    %v354 = vadd.f32 0.0, %v353
    %v355 = vpop.f32.mrf.mxu0
    %356 = vdwg.mxu0
    %v358 = vrot.slane %v354, 4
    %v360 = vadd.f32 %v117, %v358
    %v361 = vtanh.pop %v360
    %v363 = vrot.slane %v361, 4
    %v364 = vsel %vm129, %v363, 0
    %366 = vmatprep.subr.mxu0 0.0
    %367 = vmatpush1.msra.mxu0 0.0
    %368 = vmatprep.subr.mxu0 0.0
    %369 = vmatpush1.msra.mxu0 0.0
    %370 = vmatprep.subr.mxu0 0.0
    %371 = vmatpush1.msra.mxu0 0.0
    %372 = vmatprep.subr.mxu0 0.0
    %373 = vmatpush1.msra.mxu0 0.0
    %374 = vmatprep.subr.mxu0 0.0
    %375 = vmatpush1.msra.mxu0 0.0
    %376 = vmatprep.subr.mxu0 0.0
    %377 = vmatpush1.msra.mxu0 0.0
    %378 = vmatprep.subr.mxu0 0.0
    %379 = vmatpush1.msra.mxu0 0.0
    %380 = vmatprep.subr.mxu0 0.0
    %381 = vmatpush1.msra.mxu0 0.0
    %382 = vmatprep.subr.mxu0 0.0
    %383 = vmatpush1.msra.mxu0 0.0
    %384 = vmatprep.subr.mxu0 0.0
    %385 = vmatpush1.msra.mxu0 0.0
    %386 = vmatprep.subr.mxu0 0.0
    %387 = vmatpush1.msra.mxu0 0.0
    %388 = vmatprep.subr.mxu0 0.0
    %389 = vmatpush1.msra.mxu0 0.0
    %390 = vmatprep.subr.mxu0 0.0
    %391 = vmatpush1.msra.mxu0 %v128
    %392 = vmatprep.subr.mxu0 0.0
    %393 = vmatpush1.msra.mxu0 %v127
    %394 = vmatprep.subr.mxu0 0.0
    %395 = vmatpush1.msra.mxu0 %v126
    %396 = vmatprep.subr.mxu0 0.0
    %397 = vmatpush1.msra.mxu0 %v125
    %398 = vmatprep.subr.mxu0 0.0
    %399 = vmatpush2.msra.mxu0 0.0
    %400 = vmatprep.subr.mxu0 0.0
    %401 = vmatpush2.msra.mxu0 0.0
    %402 = vmatprep.subr.mxu0 0.0
    %403 = vmatpush2.msra.mxu0 0.0
    %404 = vmatprep.subr.mxu0 0.0
    %405 = vmatpush2.msra.mxu0 0.0
    %406 = vmatprep.subr.mxu0 0.0
    %407 = vmatpush2.msra.mxu0 0.0
    %408 = vmatprep.subr.mxu0 0.0
    %409 = vmatpush2.msra.mxu0 0.0
    %410 = vmatprep.subr.mxu0 0.0
    %411 = vmatpush2.msra.mxu0 0.0
    %412 = vmatprep.subr.mxu0 0.0
    %413 = vmatpush2.msra.mxu0 0.0
    %414 = vmatprep.subr.mxu0 0.0
    %415 = vmatpush2.msra.mxu0 0.0
    %416 = vmatprep.subr.mxu0 0.0
    %417 = vmatpush2.msra.mxu0 0.0
    %418 = vmatprep.subr.mxu0 0.0
    %419 = vmatpush2.msra.mxu0 0.0
    %420 = vmatprep.subr.mxu0 0.0
    %421 = vmatpush2.msra.mxu0 0.0
    %422 = vmatprep.subr.mxu0 0.0
    %423 = vmatpush2.msra.mxu0 0.0
    %424 = vmatprep.subr.mxu0 0.0
    %425 = vmatpush2.msra.mxu0 0.0
    %426 = vmatprep.subr.mxu0 0.0
    %427 = vmatpush2.msra.mxu0 0.0
    %428 = vmatprep.subr.mxu0 0.0
    %429 = vmatpush2.msra.mxu0 0.0
    %430 = vmatprep.mubr.f32.mxu0 0.0
    %431 = vmatmul.mubr.f32.gmra.mxu0 %v364
    %v432 = vpop.f32.mrf.mxu0
    %v433 = vadd.f32 0.0, %v432
    %v434 = vpop.f32.mrf.mxu0
    %435 = vdwg.mxu0
    %v437 = vrot.slane %v433, 2
    %v439 = vadd.f32 %v117, %v437
    %v440 = vtanh.pop %v439
    %v442 = vrot.slane %v440, 6
    %v443 = vsel %vm129, %v442, 0
    %445 = vmatprep.subr.mxu0 0.0
    %446 = vmatpush1.msra.mxu0 0.0
    %447 = vmatprep.subr.mxu0 0.0
    %448 = vmatpush1.msra.mxu0 0.0
    %449 = vmatprep.subr.mxu0 0.0
    %450 = vmatpush1.msra.mxu0 0.0
    %451 = vmatprep.subr.mxu0 0.0
    %452 = vmatpush1.msra.mxu0 0.0
    %453 = vmatprep.subr.mxu0 0.0
    %454 = vmatpush1.msra.mxu0 0.0
    %455 = vmatprep.subr.mxu0 0.0
    %456 = vmatpush1.msra.mxu0 0.0
    %457 = vmatprep.subr.mxu0 0.0
    %458 = vmatpush1.msra.mxu0 0.0
    %459 = vmatprep.subr.mxu0 0.0
    %460 = vmatpush1.msra.mxu0 0.0
    %461 = vmatprep.subr.mxu0 0.0
    %462 = vmatpush1.msra.mxu0 0.0
    %463 = vmatprep.subr.mxu0 0.0
    %464 = vmatpush1.msra.mxu0 0.0
    %465 = vmatprep.subr.mxu0 0.0
    %466 = vmatpush1.msra.mxu0 0.0
    %467 = vmatprep.subr.mxu0 0.0
    %468 = vmatpush1.msra.mxu0 0.0
    %469 = vmatprep.subr.mxu0 0.0
    %470 = vmatpush1.msra.mxu0 %v128
    %471 = vmatprep.subr.mxu0 0.0
    %472 = vmatpush1.msra.mxu0 %v127
    %473 = vmatprep.subr.mxu0 0.0
    %474 = vmatpush1.msra.mxu0 %v126
    %475 = vmatprep.subr.mxu0 0.0
    %476 = vmatpush1.msra.mxu0 %v125
    %477 = vmatprep.subr.mxu0 0.0
    %478 = vmatpush2.msra.mxu0 0.0
    %479 = vmatprep.subr.mxu0 0.0
    %480 = vmatpush2.msra.mxu0 0.0
    %481 = vmatprep.subr.mxu0 0.0
    %482 = vmatpush2.msra.mxu0 0.0
    %483 = vmatprep.subr.mxu0 0.0
    %484 = vmatpush2.msra.mxu0 0.0
    %485 = vmatprep.subr.mxu0 0.0
    %486 = vmatpush2.msra.mxu0 0.0
    %487 = vmatprep.subr.mxu0 0.0
    %488 = vmatpush2.msra.mxu0 0.0
    %489 = vmatprep.subr.mxu0 0.0
    %490 = vmatpush2.msra.mxu0 0.0
    %491 = vmatprep.subr.mxu0 0.0
    %492 = vmatpush2.msra.mxu0 0.0
    %493 = vmatprep.subr.mxu0 0.0
    %494 = vmatpush2.msra.mxu0 0.0
    %495 = vmatprep.subr.mxu0 0.0
    %496 = vmatpush2.msra.mxu0 0.0
    %497 = vmatprep.subr.mxu0 0.0
    %498 = vmatpush2.msra.mxu0 0.0
    %499 = vmatprep.subr.mxu0 0.0
    %500 = vmatpush2.msra.mxu0 0.0
    %501 = vmatprep.subr.mxu0 0.0
    %502 = vmatpush2.msra.mxu0 0.0
    %503 = vmatprep.subr.mxu0 0.0
    %504 = vmatpush2.msra.mxu0 0.0
    %505 = vmatprep.subr.mxu0 0.0
    %506 = vmatpush2.msra.mxu0 0.0
    %507 = vmatprep.subr.mxu0 0.0
    %508 = vmatpush2.msra.mxu0 0.0
    %509 = vmatprep.mubr.f32.mxu0 0.0
    %510 = vmatmul.mubr.f32.gmra.mxu0 %v443
    %v511 = vpop.f32.mrf.mxu0
    %v512 = vadd.f32 0.0, %v511
    %v513 = vpop.f32.mrf.mxu0
    %514 = vdwg.mxu0
    %v515 = vadd.f32 %v122, %v512
    %v516 = vtanh.pop %v515
    %v518 = vsel %vm129, %v516, 0
    %520 = vmatprep.subr.mxu0 0.0
    %521 = vmatpush1.msra.mxu0 0.0
    %522 = vmatprep.subr.mxu0 0.0
    %523 = vmatpush1.msra.mxu0 0.0
    %524 = vmatprep.subr.mxu0 0.0
    %525 = vmatpush1.msra.mxu0 0.0
    %526 = vmatprep.subr.mxu0 0.0
    %527 = vmatpush1.msra.mxu0 0.0
    %528 = vmatprep.subr.mxu0 0.0
    %529 = vmatpush1.msra.mxu0 0.0
    %530 = vmatprep.subr.mxu0 0.0
    %531 = vmatpush1.msra.mxu0 0.0
    %532 = vmatprep.subr.mxu0 0.0
    %533 = vmatpush1.msra.mxu0 0.0
    %534 = vmatprep.subr.mxu0 0.0
    %535 = vmatpush1.msra.mxu0 0.0
    %536 = vmatprep.subr.mxu0 0.0
    %537 = vmatpush1.msra.mxu0 0.0
    %538 = vmatprep.subr.mxu0 0.0
    %539 = vmatpush1.msra.mxu0 0.0
    %540 = vmatprep.subr.mxu0 0.0
    %541 = vmatpush1.msra.mxu0 0.0
    %542 = vmatprep.subr.mxu0 0.0
    %543 = vmatpush1.msra.mxu0 0.0
    %544 = vmatprep.subr.mxu0 0.0
    %545 = vmatpush1.msra.mxu0 %v128
    %546 = vmatprep.subr.mxu0 0.0
    %547 = vmatpush1.msra.mxu0 %v127
    %548 = vmatprep.subr.mxu0 0.0
    %549 = vmatpush1.msra.mxu0 %v126
    %550 = vmatprep.subr.mxu0 0.0
    %551 = vmatpush1.msra.mxu0 %v125
    %552 = vmatprep.subr.mxu0 0.0
    %553 = vmatpush2.msra.mxu0 0.0
    %554 = vmatprep.subr.mxu0 0.0
    %555 = vmatpush2.msra.mxu0 0.0
    %556 = vmatprep.subr.mxu0 0.0
    %557 = vmatpush2.msra.mxu0 0.0
    %558 = vmatprep.subr.mxu0 0.0
    %559 = vmatpush2.msra.mxu0 0.0
    %560 = vmatprep.subr.mxu0 0.0
    %561 = vmatpush2.msra.mxu0 0.0
    %562 = vmatprep.subr.mxu0 0.0
    %563 = vmatpush2.msra.mxu0 0.0
    %564 = vmatprep.subr.mxu0 0.0
    %565 = vmatpush2.msra.mxu0 0.0
    %566 = vmatprep.subr.mxu0 0.0
    %567 = vmatpush2.msra.mxu0 0.0
    %568 = vmatprep.subr.mxu0 0.0
    %569 = vmatpush2.msra.mxu0 0.0
    %570 = vmatprep.subr.mxu0 0.0
    %571 = vmatpush2.msra.mxu0 0.0
    %572 = vmatprep.subr.mxu0 0.0
    %573 = vmatpush2.msra.mxu0 0.0
    %574 = vmatprep.subr.mxu0 0.0
    %575 = vmatpush2.msra.mxu0 0.0
    %576 = vmatprep.subr.mxu0 0.0
    %577 = vmatpush2.msra.mxu0 0.0
    %578 = vmatprep.subr.mxu0 0.0
    %579 = vmatpush2.msra.mxu0 0.0
    %580 = vmatprep.subr.mxu0 0.0
    %581 = vmatpush2.msra.mxu0 0.0
    %582 = vmatprep.subr.mxu0 0.0
    %583 = vmatpush2.msra.mxu0 0.0
    %584 = vmatprep.mubr.f32.mxu0 0.0
    %585 = vmatmul.mubr.f32.gmra.mxu0 %v518
    %v586 = vpop.f32.mrf.mxu0
    %v587 = vadd.f32 0.0, %v586
    %v588 = vpop.f32.mrf.mxu0
    %589 = vdwg.mxu0
    %v591 = vrot.slane %v587, 6
    %v593 = vadd.f32 %v122, %v591
    %v594 = vtanh.pop %v593
    %v596 = vrot.slane %v594, 2
    %v597 = vsel %vm129, %v596, 0
    %599 = vmatprep.subr.mxu0 0.0
    %600 = vmatpush1.msra.mxu0 0.0
    %601 = vmatprep.subr.mxu0 0.0
    %602 = vmatpush1.msra.mxu0 0.0
    %603 = vmatprep.subr.mxu0 0.0
    %604 = vmatpush1.msra.mxu0 0.0
    %605 = vmatprep.subr.mxu0 0.0
    %606 = vmatpush1.msra.mxu0 0.0
    %607 = vmatprep.subr.mxu0 0.0
    %608 = vmatpush1.msra.mxu0 0.0
    %609 = vmatprep.subr.mxu0 0.0
    %610 = vmatpush1.msra.mxu0 0.0
    %611 = vmatprep.subr.mxu0 0.0
    %612 = vmatpush1.msra.mxu0 0.0
    %613 = vmatprep.subr.mxu0 0.0
    %614 = vmatpush1.msra.mxu0 0.0
    %615 = vmatprep.subr.mxu0 0.0
    %616 = vmatpush1.msra.mxu0 0.0
    %617 = vmatprep.subr.mxu0 0.0
    %618 = vmatpush1.msra.mxu0 0.0
    %619 = vmatprep.subr.mxu0 0.0
    %620 = vmatpush1.msra.mxu0 0.0
    %621 = vmatprep.subr.mxu0 0.0
    %622 = vmatpush1.msra.mxu0 0.0
    %623 = vmatprep.subr.mxu0 0.0
    %624 = vmatpush1.msra.mxu0 %v128
    %625 = vmatprep.subr.mxu0 0.0
    %626 = vmatpush1.msra.mxu0 %v127
    %627 = vmatprep.subr.mxu0 0.0
    %628 = vmatpush1.msra.mxu0 %v126
    %629 = vmatprep.subr.mxu0 0.0
    %630 = vmatpush1.msra.mxu0 %v125
    %631 = vmatprep.subr.mxu0 0.0
    %632 = vmatpush2.msra.mxu0 0.0
    %633 = vmatprep.subr.mxu0 0.0
    %634 = vmatpush2.msra.mxu0 0.0
    %635 = vmatprep.subr.mxu0 0.0
    %636 = vmatpush2.msra.mxu0 0.0
    %637 = vmatprep.subr.mxu0 0.0
    %638 = vmatpush2.msra.mxu0 0.0
    %639 = vmatprep.subr.mxu0 0.0
    %640 = vmatpush2.msra.mxu0 0.0
    %641 = vmatprep.subr.mxu0 0.0
    %642 = vmatpush2.msra.mxu0 0.0
    %643 = vmatprep.subr.mxu0 0.0
    %644 = vmatpush2.msra.mxu0 0.0
    %645 = vmatprep.subr.mxu0 0.0
    %646 = vmatpush2.msra.mxu0 0.0
    %647 = vmatprep.subr.mxu0 0.0
    %648 = vmatpush2.msra.mxu0 0.0
    %649 = vmatprep.subr.mxu0 0.0
    %650 = vmatpush2.msra.mxu0 0.0
    %651 = vmatprep.subr.mxu0 0.0
    %652 = vmatpush2.msra.mxu0 0.0
    %653 = vmatprep.subr.mxu0 0.0
    %654 = vmatpush2.msra.mxu0 0.0
    %655 = vmatprep.subr.mxu0 0.0
    %656 = vmatpush2.msra.mxu0 0.0
    %657 = vmatprep.subr.mxu0 0.0
    %658 = vmatpush2.msra.mxu0 0.0
    %659 = vmatprep.subr.mxu0 0.0
    %660 = vmatpush2.msra.mxu0 0.0
    %661 = vmatprep.subr.mxu0 0.0
    %662 = vmatpush2.msra.mxu0 0.0
    %663 = vmatprep.mubr.f32.mxu0 0.0
    %664 = vmatmul.mubr.f32.gmra.mxu0 %v597
    %v665 = vpop.f32.mrf.mxu0
    %v666 = vadd.f32 0.0, %v665
    %v667 = vpop.f32.mrf.mxu0
    %668 = vdwg.mxu0
    %v670 = vrot.slane %v666, 4
    %v672 = vadd.f32 %v122, %v670
    %v673 = vtanh.pop %v672
    %v675 = vrot.slane %v673, 4
    %v676 = vsel %vm129, %v675, 0
    %678 = vmatprep.subr.mxu0 0.0
    %679 = vmatpush1.msra.mxu0 0.0
    %680 = vmatprep.subr.mxu0 0.0
    %681 = vmatpush1.msra.mxu0 0.0
    %682 = vmatprep.subr.mxu0 0.0
    %683 = vmatpush1.msra.mxu0 0.0
    %684 = vmatprep.subr.mxu0 0.0
    %685 = vmatpush1.msra.mxu0 0.0
    %686 = vmatprep.subr.mxu0 0.0
    %687 = vmatpush1.msra.mxu0 0.0
    %688 = vmatprep.subr.mxu0 0.0
    %689 = vmatpush1.msra.mxu0 0.0
    %690 = vmatprep.subr.mxu0 0.0
    %691 = vmatpush1.msra.mxu0 0.0
    %692 = vmatprep.subr.mxu0 0.0
    %693 = vmatpush1.msra.mxu0 0.0
    %694 = vmatprep.subr.mxu0 0.0
    %695 = vmatpush1.msra.mxu0 0.0
    %696 = vmatprep.subr.mxu0 0.0
    %697 = vmatpush1.msra.mxu0 0.0
    %698 = vmatprep.subr.mxu0 0.0
    %699 = vmatpush1.msra.mxu0 0.0
    %700 = vmatprep.subr.mxu0 0.0
    %701 = vmatpush1.msra.mxu0 0.0
    %702 = vmatprep.subr.mxu0 0.0
    %703 = vmatpush1.msra.mxu0 %v128
    %704 = vmatprep.subr.mxu0 0.0
    %705 = vmatpush1.msra.mxu0 %v127
    %706 = vmatprep.subr.mxu0 0.0
    %707 = vmatpush1.msra.mxu0 %v126
    %708 = vmatprep.subr.mxu0 0.0
    %709 = vmatpush1.msra.mxu0 %v125
    %710 = vmatprep.subr.mxu0 0.0
    %711 = vmatpush2.msra.mxu0 0.0
    %712 = vmatprep.subr.mxu0 0.0
    %713 = vmatpush2.msra.mxu0 0.0
    %714 = vmatprep.subr.mxu0 0.0
    %715 = vmatpush2.msra.mxu0 0.0
    %716 = vmatprep.subr.mxu0 0.0
    %717 = vmatpush2.msra.mxu0 0.0
    %718 = vmatprep.subr.mxu0 0.0
    %719 = vmatpush2.msra.mxu0 0.0
    %720 = vmatprep.subr.mxu0 0.0
    %721 = vmatpush2.msra.mxu0 0.0
    %722 = vmatprep.subr.mxu0 0.0
    %723 = vmatpush2.msra.mxu0 0.0
    %724 = vmatprep.subr.mxu0 0.0
    %725 = vmatpush2.msra.mxu0 0.0
    %726 = vmatprep.subr.mxu0 0.0
    %727 = vmatpush2.msra.mxu0 0.0
    %728 = vmatprep.subr.mxu0 0.0
    %729 = vmatpush2.msra.mxu0 0.0
    %730 = vmatprep.subr.mxu0 0.0
    %731 = vmatpush2.msra.mxu0 0.0
    %732 = vmatprep.subr.mxu0 0.0
    %733 = vmatpush2.msra.mxu0 0.0
    %734 = vmatprep.subr.mxu0 0.0
    %735 = vmatpush2.msra.mxu0 0.0
    %736 = vmatprep.subr.mxu0 0.0
    %737 = vmatpush2.msra.mxu0 0.0
    %738 = vmatprep.subr.mxu0 0.0
    %739 = vmatpush2.msra.mxu0 0.0
    %740 = vmatprep.subr.mxu0 0.0
    %741 = vmatpush2.msra.mxu0 0.0
    %742 = vmatprep.mubr.f32.mxu0 0.0
    %743 = vmatmul.mubr.f32.gmra.mxu0 %v676
    %v744 = vpop.f32.mrf.mxu0
    %v745 = vadd.f32 0.0, %v744
    %v746 = vpop.f32.mrf.mxu0
    %747 = vdwg.mxu0
    %v749 = vrot.slane %v745, 2
    %v751 = vadd.f32 %v122, %v749
    %v752 = vtanh.pop %v751
    %vm753 = vcmask 1041408
    %v754 = vsel %vm753, %v204, %v282
    %vm755 = vcmask 1043456
    %v756 = vsel %vm755, %v754, %v361
    %vm757 = vcmask 1045504
    %v758 = vsel %vm757, %v756, %v440
    %v759 = vsel %vm753, %v516, %v594
    %v760 = vsel %vm755, %v759, %v673
    %v761 = vsel %vm757, %v760, %v752
    %v762 = vld [vmem:[%s4] sm:$0xff]
    %v763 = vld [vmem:[%s4 + $0x8] sm:$0xff]
    %v764 = vld [vmem:[%s4 + $0x10] sm:$0xff]
    %v765 = vld [vmem:[%s4 + $0x18] sm:$0xff]
    %v766 = vld [vmem:[%s6] sm:$0x1]
    %v768 = vlaneseq
    %v769 = vshrl.u32 %v768, 7
    %v770 = vsub.s32 0, %v769
    %v771 = vrot.slane %v766, %v770
    %v774 = vsel %vm129, %v758, 0
    %v777 = vsel %vm129, %v761, 0
    %779 = vmatprep.subr.mxu0 0.0
    %780 = vmatpush1.msra.mxu0 0.0
    %781 = vmatprep.subr.mxu0 0.0
    %782 = vmatpush1.msra.mxu0 0.0
    %783 = vmatprep.subr.mxu0 0.0
    %784 = vmatpush1.msra.mxu0 0.0
    %785 = vmatprep.subr.mxu0 0.0
    %786 = vmatpush1.msra.mxu0 0.0
    %787 = vmatprep.subr.mxu0 0.0
    %788 = vmatpush1.msra.mxu0 0.0
    %789 = vmatprep.subr.mxu0 0.0
    %790 = vmatpush1.msra.mxu0 0.0
    %791 = vmatprep.subr.mxu0 0.0
    %792 = vmatpush1.msra.mxu0 0.0
    %793 = vmatprep.subr.mxu0 0.0
    %794 = vmatpush1.msra.mxu0 0.0
    %795 = vmatprep.subr.mxu0 0.0
    %796 = vmatpush1.msra.mxu0 0.0
    %797 = vmatprep.subr.mxu0 0.0
    %798 = vmatpush1.msra.mxu0 0.0
    %799 = vmatprep.subr.mxu0 0.0
    %800 = vmatpush1.msra.mxu0 0.0
    %801 = vmatprep.subr.mxu0 0.0
    %802 = vmatpush1.msra.mxu0 0.0
    %803 = vmatprep.subr.mxu0 0.0
    %804 = vmatpush1.msra.mxu0 %v765
    %805 = vmatprep.subr.mxu0 0.0
    %806 = vmatpush1.msra.mxu0 %v764
    %807 = vmatprep.subr.mxu0 0.0
    %808 = vmatpush1.msra.mxu0 %v763
    %809 = vmatprep.subr.mxu0 0.0
    %810 = vmatpush1.msra.mxu0 %v762
    %811 = vmatprep.subr.mxu0 0.0
    %812 = vmatpush2.msra.mxu0 0.0
    %813 = vmatprep.subr.mxu0 0.0
    %814 = vmatpush2.msra.mxu0 0.0
    %815 = vmatprep.subr.mxu0 0.0
    %816 = vmatpush2.msra.mxu0 0.0
    %817 = vmatprep.subr.mxu0 0.0
    %818 = vmatpush2.msra.mxu0 0.0
    %819 = vmatprep.subr.mxu0 0.0
    %820 = vmatpush2.msra.mxu0 0.0
    %821 = vmatprep.subr.mxu0 0.0
    %822 = vmatpush2.msra.mxu0 0.0
    %823 = vmatprep.subr.mxu0 0.0
    %824 = vmatpush2.msra.mxu0 0.0
    %825 = vmatprep.subr.mxu0 0.0
    %826 = vmatpush2.msra.mxu0 0.0
    %827 = vmatprep.subr.mxu0 0.0
    %828 = vmatpush2.msra.mxu0 0.0
    %829 = vmatprep.subr.mxu0 0.0
    %830 = vmatpush2.msra.mxu0 0.0
    %831 = vmatprep.subr.mxu0 0.0
    %832 = vmatpush2.msra.mxu0 0.0
    %833 = vmatprep.subr.mxu0 0.0
    %834 = vmatpush2.msra.mxu0 0.0
    %835 = vmatprep.subr.mxu0 0.0
    %836 = vmatpush2.msra.mxu0 0.0
    %837 = vmatprep.subr.mxu0 0.0
    %838 = vmatpush2.msra.mxu0 0.0
    %839 = vmatprep.subr.mxu0 0.0
    %840 = vmatpush2.msra.mxu0 0.0
    %841 = vmatprep.subr.mxu0 0.0
    %842 = vmatpush2.msra.mxu0 0.0
    %843 = vmatprep.mubr.f32.mxu0 0.0
    %844 = vmatmul.mubr.f32.gmra.mxu0 %v774
    %v845 = vpop.f32.mrf.mxu0
    %v846 = vadd.f32 %v771, %v845
    %v847 = vpop.f32.mrf.mxu0
    %848 = vmatprep.mubr.f32.mxu0 0.0
    %849 = vmatmul.mubr.f32.gmra.mxu0 %v777
    %v850 = vpop.f32.mrf.mxu0
    %v851 = vadd.f32 %v771, %v850
    %v852 = vpop.f32.mrf.mxu0
    %853 = vdwg.mxu0
    %v854 = vld [vmem:[%s5] sm:$0xff]
    %v855 = vld [vmem:[%s5 + $0x8] sm:$0xff]
    %v856 = vld [vmem:[%s5 + $0x10] sm:$0xff]
    %v857 = vld [vmem:[%s5 + $0x18] sm:$0xff]
    %858 = vmatprep.subr.mxu0 0.0
    %859 = vmatpush1.msra.mxu0 0.0
    %860 = vmatprep.subr.mxu0 0.0
    %861 = vmatpush1.msra.mxu0 0.0
    %862 = vmatprep.subr.mxu0 0.0
    %863 = vmatpush1.msra.mxu0 0.0
    %864 = vmatprep.subr.mxu0 0.0
    %865 = vmatpush1.msra.mxu0 0.0
    %866 = vmatprep.subr.mxu0 0.0
    %867 = vmatpush1.msra.mxu0 0.0
    %868 = vmatprep.subr.mxu0 0.0
    %869 = vmatpush1.msra.mxu0 0.0
    %870 = vmatprep.subr.mxu0 0.0
    %871 = vmatpush1.msra.mxu0 0.0
    %872 = vmatprep.subr.mxu0 0.0
    %873 = vmatpush1.msra.mxu0 0.0
    %874 = vmatprep.subr.mxu0 0.0
    %875 = vmatpush1.msra.mxu0 0.0
    %876 = vmatprep.subr.mxu0 0.0
    %877 = vmatpush1.msra.mxu0 0.0
    %878 = vmatprep.subr.mxu0 0.0
    %879 = vmatpush1.msra.mxu0 0.0
    %880 = vmatprep.subr.mxu0 0.0
    %881 = vmatpush1.msra.mxu0 0.0
    %882 = vmatprep.subr.mxu0 0.0
    %883 = vmatpush1.msra.mxu0 %v857
    %884 = vmatprep.subr.mxu0 0.0
    %885 = vmatpush1.msra.mxu0 %v856
    %886 = vmatprep.subr.mxu0 0.0
    %887 = vmatpush1.msra.mxu0 %v855
    %888 = vmatprep.subr.mxu0 0.0
    %889 = vmatpush1.msra.mxu0 %v854
    %890 = vmatprep.subr.mxu0 0.0
    %891 = vmatpush2.msra.mxu0 0.0
    %892 = vmatprep.subr.mxu0 0.0
    %893 = vmatpush2.msra.mxu0 0.0
    %894 = vmatprep.subr.mxu0 0.0
    %895 = vmatpush2.msra.mxu0 0.0
    %896 = vmatprep.subr.mxu0 0.0
    %897 = vmatpush2.msra.mxu0 0.0
    %898 = vmatprep.subr.mxu0 0.0
    %899 = vmatpush2.msra.mxu0 0.0
    %900 = vmatprep.subr.mxu0 0.0
    %901 = vmatpush2.msra.mxu0 0.0
    %902 = vmatprep.subr.mxu0 0.0
    %903 = vmatpush2.msra.mxu0 0.0
    %904 = vmatprep.subr.mxu0 0.0
    %905 = vmatpush2.msra.mxu0 0.0
    %906 = vmatprep.subr.mxu0 0.0
    %907 = vmatpush2.msra.mxu0 0.0
    %908 = vmatprep.subr.mxu0 0.0
    %909 = vmatpush2.msra.mxu0 0.0
    %910 = vmatprep.subr.mxu0 0.0
    %911 = vmatpush2.msra.mxu0 0.0
    %912 = vmatprep.subr.mxu0 0.0
    %913 = vmatpush2.msra.mxu0 0.0
    %914 = vmatprep.subr.mxu0 0.0
    %915 = vmatpush2.msra.mxu0 0.0
    %916 = vmatprep.subr.mxu0 0.0
    %917 = vmatpush2.msra.mxu0 0.0
    %918 = vmatprep.subr.mxu0 0.0
    %919 = vmatpush2.msra.mxu0 0.0
    %920 = vmatprep.subr.mxu0 0.0
    %921 = vmatpush2.msra.mxu0 0.0
    %922 = vmatprep.mubr.f32.mxu0 0.0
    %923 = vmatmul.mubr.f32.gmra.mxu0 %v131
    %v924 = vpop.f32.mrf.mxu0
    %v925 = vadd.f32 0.0, %v924
    %v926 = vpop.f32.mrf.mxu0
    %927 = vdwg.mxu0
    %v928 = vadd.f32 %v846, %v925
    %v929 = vtanh.pop %v928
    %v931 = vsel %vm129, %v929, 0
    %933 = vmatprep.subr.mxu0 0.0
    %934 = vmatpush1.msra.mxu0 0.0
    %935 = vmatprep.subr.mxu0 0.0
    %936 = vmatpush1.msra.mxu0 0.0
    %937 = vmatprep.subr.mxu0 0.0
    %938 = vmatpush1.msra.mxu0 0.0
    %939 = vmatprep.subr.mxu0 0.0
    %940 = vmatpush1.msra.mxu0 0.0
    %941 = vmatprep.subr.mxu0 0.0
    %942 = vmatpush1.msra.mxu0 0.0
    %943 = vmatprep.subr.mxu0 0.0
    %944 = vmatpush1.msra.mxu0 0.0
    %945 = vmatprep.subr.mxu0 0.0
    %946 = vmatpush1.msra.mxu0 0.0
    %947 = vmatprep.subr.mxu0 0.0
    %948 = vmatpush1.msra.mxu0 0.0
    %949 = vmatprep.subr.mxu0 0.0
    %950 = vmatpush1.msra.mxu0 0.0
    %951 = vmatprep.subr.mxu0 0.0
    %952 = vmatpush1.msra.mxu0 0.0
    %953 = vmatprep.subr.mxu0 0.0
    %954 = vmatpush1.msra.mxu0 0.0
    %955 = vmatprep.subr.mxu0 0.0
    %956 = vmatpush1.msra.mxu0 0.0
    %957 = vmatprep.subr.mxu0 0.0
    %958 = vmatpush1.msra.mxu0 %v857
    %959 = vmatprep.subr.mxu0 0.0
    %960 = vmatpush1.msra.mxu0 %v856
    %961 = vmatprep.subr.mxu0 0.0
    %962 = vmatpush1.msra.mxu0 %v855
    %963 = vmatprep.subr.mxu0 0.0
    %964 = vmatpush1.msra.mxu0 %v854
    %965 = vmatprep.subr.mxu0 0.0
    %966 = vmatpush2.msra.mxu0 0.0
    %967 = vmatprep.subr.mxu0 0.0
    %968 = vmatpush2.msra.mxu0 0.0
    %969 = vmatprep.subr.mxu0 0.0
    %970 = vmatpush2.msra.mxu0 0.0
    %971 = vmatprep.subr.mxu0 0.0
    %972 = vmatpush2.msra.mxu0 0.0
    %973 = vmatprep.subr.mxu0 0.0
    %974 = vmatpush2.msra.mxu0 0.0
    %975 = vmatprep.subr.mxu0 0.0
    %976 = vmatpush2.msra.mxu0 0.0
    %977 = vmatprep.subr.mxu0 0.0
    %978 = vmatpush2.msra.mxu0 0.0
    %979 = vmatprep.subr.mxu0 0.0
    %980 = vmatpush2.msra.mxu0 0.0
    %981 = vmatprep.subr.mxu0 0.0
    %982 = vmatpush2.msra.mxu0 0.0
    %983 = vmatprep.subr.mxu0 0.0
    %984 = vmatpush2.msra.mxu0 0.0
    %985 = vmatprep.subr.mxu0 0.0
    %986 = vmatpush2.msra.mxu0 0.0
    %987 = vmatprep.subr.mxu0 0.0
    %988 = vmatpush2.msra.mxu0 0.0
    %989 = vmatprep.subr.mxu0 0.0
    %990 = vmatpush2.msra.mxu0 0.0
    %991 = vmatprep.subr.mxu0 0.0
    %992 = vmatpush2.msra.mxu0 0.0
    %993 = vmatprep.subr.mxu0 0.0
    %994 = vmatpush2.msra.mxu0 0.0
    %995 = vmatprep.subr.mxu0 0.0
    %996 = vmatpush2.msra.mxu0 0.0
    %997 = vmatprep.mubr.f32.mxu0 0.0
    %998 = vmatmul.mubr.f32.gmra.mxu0 %v931
    %v999 = vpop.f32.mrf.mxu0
    %v1000 = vadd.f32 0.0, %v999
    %v1001 = vpop.f32.mrf.mxu0
    %1002 = vdwg.mxu0
    %v1004 = vrot.slane %v1000, 6
    %v1006 = vadd.f32 %v846, %v1004
    %v1007 = vtanh.pop %v1006
    %v1009 = vrot.slane %v1007, 2
    %v1010 = vsel %vm129, %v1009, 0
    %1012 = vmatprep.subr.mxu0 0.0
    %1013 = vmatpush1.msra.mxu0 0.0
    %1014 = vmatprep.subr.mxu0 0.0
    %1015 = vmatpush1.msra.mxu0 0.0
    %1016 = vmatprep.subr.mxu0 0.0
    %1017 = vmatpush1.msra.mxu0 0.0
    %1018 = vmatprep.subr.mxu0 0.0
    %1019 = vmatpush1.msra.mxu0 0.0
    %1020 = vmatprep.subr.mxu0 0.0
    %1021 = vmatpush1.msra.mxu0 0.0
    %1022 = vmatprep.subr.mxu0 0.0
    %1023 = vmatpush1.msra.mxu0 0.0
    %1024 = vmatprep.subr.mxu0 0.0
    %1025 = vmatpush1.msra.mxu0 0.0
    %1026 = vmatprep.subr.mxu0 0.0
    %1027 = vmatpush1.msra.mxu0 0.0
    %1028 = vmatprep.subr.mxu0 0.0
    %1029 = vmatpush1.msra.mxu0 0.0
    %1030 = vmatprep.subr.mxu0 0.0
    %1031 = vmatpush1.msra.mxu0 0.0
    %1032 = vmatprep.subr.mxu0 0.0
    %1033 = vmatpush1.msra.mxu0 0.0
    %1034 = vmatprep.subr.mxu0 0.0
    %1035 = vmatpush1.msra.mxu0 0.0
    %1036 = vmatprep.subr.mxu0 0.0
    %1037 = vmatpush1.msra.mxu0 %v857
    %1038 = vmatprep.subr.mxu0 0.0
    %1039 = vmatpush1.msra.mxu0 %v856
    %1040 = vmatprep.subr.mxu0 0.0
    %1041 = vmatpush1.msra.mxu0 %v855
    %1042 = vmatprep.subr.mxu0 0.0
    %1043 = vmatpush1.msra.mxu0 %v854
    %1044 = vmatprep.subr.mxu0 0.0
    %1045 = vmatpush2.msra.mxu0 0.0
    %1046 = vmatprep.subr.mxu0 0.0
    %1047 = vmatpush2.msra.mxu0 0.0
    %1048 = vmatprep.subr.mxu0 0.0
    %1049 = vmatpush2.msra.mxu0 0.0
    %1050 = vmatprep.subr.mxu0 0.0
    %1051 = vmatpush2.msra.mxu0 0.0
    %1052 = vmatprep.subr.mxu0 0.0
    %1053 = vmatpush2.msra.mxu0 0.0
    %1054 = vmatprep.subr.mxu0 0.0
    %1055 = vmatpush2.msra.mxu0 0.0
    %1056 = vmatprep.subr.mxu0 0.0
    %1057 = vmatpush2.msra.mxu0 0.0
    %1058 = vmatprep.subr.mxu0 0.0
    %1059 = vmatpush2.msra.mxu0 0.0
    %1060 = vmatprep.subr.mxu0 0.0
    %1061 = vmatpush2.msra.mxu0 0.0
    %1062 = vmatprep.subr.mxu0 0.0
    %1063 = vmatpush2.msra.mxu0 0.0
    %1064 = vmatprep.subr.mxu0 0.0
    %1065 = vmatpush2.msra.mxu0 0.0
    %1066 = vmatprep.subr.mxu0 0.0
    %1067 = vmatpush2.msra.mxu0 0.0
    %1068 = vmatprep.subr.mxu0 0.0
    %1069 = vmatpush2.msra.mxu0 0.0
    %1070 = vmatprep.subr.mxu0 0.0
    %1071 = vmatpush2.msra.mxu0 0.0
    %1072 = vmatprep.subr.mxu0 0.0
    %1073 = vmatpush2.msra.mxu0 0.0
    %1074 = vmatprep.subr.mxu0 0.0
    %1075 = vmatpush2.msra.mxu0 0.0
    %1076 = vmatprep.mubr.f32.mxu0 0.0
    %1077 = vmatmul.mubr.f32.gmra.mxu0 %v1010
    %v1078 = vpop.f32.mrf.mxu0
    %v1079 = vadd.f32 0.0, %v1078
    %v1080 = vpop.f32.mrf.mxu0
    %1081 = vdwg.mxu0
    %v1083 = vrot.slane %v1079, 4
    %v1085 = vadd.f32 %v846, %v1083
    %v1086 = vtanh.pop %v1085
    %v1088 = vrot.slane %v1086, 4
    %v1089 = vsel %vm129, %v1088, 0
    %1091 = vmatprep.subr.mxu0 0.0
    %1092 = vmatpush1.msra.mxu0 0.0
    %1093 = vmatprep.subr.mxu0 0.0
    %1094 = vmatpush1.msra.mxu0 0.0
    %1095 = vmatprep.subr.mxu0 0.0
    %1096 = vmatpush1.msra.mxu0 0.0
    %1097 = vmatprep.subr.mxu0 0.0
    %1098 = vmatpush1.msra.mxu0 0.0
    %1099 = vmatprep.subr.mxu0 0.0
    %1100 = vmatpush1.msra.mxu0 0.0
    %1101 = vmatprep.subr.mxu0 0.0
    %1102 = vmatpush1.msra.mxu0 0.0
    %1103 = vmatprep.subr.mxu0 0.0
    %1104 = vmatpush1.msra.mxu0 0.0
    %1105 = vmatprep.subr.mxu0 0.0
    %1106 = vmatpush1.msra.mxu0 0.0
    %1107 = vmatprep.subr.mxu0 0.0
    %1108 = vmatpush1.msra.mxu0 0.0
    %1109 = vmatprep.subr.mxu0 0.0
    %1110 = vmatpush1.msra.mxu0 0.0
    %1111 = vmatprep.subr.mxu0 0.0
    %1112 = vmatpush1.msra.mxu0 0.0
    %1113 = vmatprep.subr.mxu0 0.0
    %1114 = vmatpush1.msra.mxu0 0.0
    %1115 = vmatprep.subr.mxu0 0.0
    %1116 = vmatpush1.msra.mxu0 %v857
    %1117 = vmatprep.subr.mxu0 0.0
    %1118 = vmatpush1.msra.mxu0 %v856
    %1119 = vmatprep.subr.mxu0 0.0
    %1120 = vmatpush1.msra.mxu0 %v855
    %1121 = vmatprep.subr.mxu0 0.0
    %1122 = vmatpush1.msra.mxu0 %v854
    %1123 = vmatprep.subr.mxu0 0.0
    %1124 = vmatpush2.msra.mxu0 0.0
    %1125 = vmatprep.subr.mxu0 0.0
    %1126 = vmatpush2.msra.mxu0 0.0
    %1127 = vmatprep.subr.mxu0 0.0
    %1128 = vmatpush2.msra.mxu0 0.0
    %1129 = vmatprep.subr.mxu0 0.0
    %1130 = vmatpush2.msra.mxu0 0.0
    %1131 = vmatprep.subr.mxu0 0.0
    %1132 = vmatpush2.msra.mxu0 0.0
    %1133 = vmatprep.subr.mxu0 0.0
    %1134 = vmatpush2.msra.mxu0 0.0
    %1135 = vmatprep.subr.mxu0 0.0
    %1136 = vmatpush2.msra.mxu0 0.0
    %1137 = vmatprep.subr.mxu0 0.0
    %1138 = vmatpush2.msra.mxu0 0.0
    %1139 = vmatprep.subr.mxu0 0.0
    %1140 = vmatpush2.msra.mxu0 0.0
    %1141 = vmatprep.subr.mxu0 0.0
    %1142 = vmatpush2.msra.mxu0 0.0
    %1143 = vmatprep.subr.mxu0 0.0
    %1144 = vmatpush2.msra.mxu0 0.0
    %1145 = vmatprep.subr.mxu0 0.0
    %1146 = vmatpush2.msra.mxu0 0.0
    %1147 = vmatprep.subr.mxu0 0.0
    %1148 = vmatpush2.msra.mxu0 0.0
    %1149 = vmatprep.subr.mxu0 0.0
    %1150 = vmatpush2.msra.mxu0 0.0
    %1151 = vmatprep.subr.mxu0 0.0
    %1152 = vmatpush2.msra.mxu0 0.0
    %1153 = vmatprep.subr.mxu0 0.0
    %1154 = vmatpush2.msra.mxu0 0.0
    %1155 = vmatprep.mubr.f32.mxu0 0.0
    %1156 = vmatmul.mubr.f32.gmra.mxu0 %v1089
    %v1157 = vpop.f32.mrf.mxu0
    %v1158 = vadd.f32 0.0, %v1157
    %v1159 = vpop.f32.mrf.mxu0
    %1160 = vdwg.mxu0
    %v1162 = vrot.slane %v1158, 2
    %v1164 = vadd.f32 %v846, %v1162
    %v1165 = vtanh.pop %v1164
    %v1167 = vrot.slane %v1165, 6
    %v1168 = vsel %vm129, %v1167, 0
    %1170 = vmatprep.subr.mxu0 0.0
    %1171 = vmatpush1.msra.mxu0 0.0
    %1172 = vmatprep.subr.mxu0 0.0
    %1173 = vmatpush1.msra.mxu0 0.0
    %1174 = vmatprep.subr.mxu0 0.0
    %1175 = vmatpush1.msra.mxu0 0.0
    %1176 = vmatprep.subr.mxu0 0.0
    %1177 = vmatpush1.msra.mxu0 0.0
    %1178 = vmatprep.subr.mxu0 0.0
    %1179 = vmatpush1.msra.mxu0 0.0
    %1180 = vmatprep.subr.mxu0 0.0
    %1181 = vmatpush1.msra.mxu0 0.0
    %1182 = vmatprep.subr.mxu0 0.0
    %1183 = vmatpush1.msra.mxu0 0.0
    %1184 = vmatprep.subr.mxu0 0.0
    %1185 = vmatpush1.msra.mxu0 0.0
    %1186 = vmatprep.subr.mxu0 0.0
    %1187 = vmatpush1.msra.mxu0 0.0
    %1188 = vmatprep.subr.mxu0 0.0
    %1189 = vmatpush1.msra.mxu0 0.0
    %1190 = vmatprep.subr.mxu0 0.0
    %1191 = vmatpush1.msra.mxu0 0.0
    %1192 = vmatprep.subr.mxu0 0.0
    %1193 = vmatpush1.msra.mxu0 0.0
    %1194 = vmatprep.subr.mxu0 0.0
    %1195 = vmatpush1.msra.mxu0 %v857
    %1196 = vmatprep.subr.mxu0 0.0
    %1197 = vmatpush1.msra.mxu0 %v856
    %1198 = vmatprep.subr.mxu0 0.0
    %1199 = vmatpush1.msra.mxu0 %v855
    %1200 = vmatprep.subr.mxu0 0.0
    %1201 = vmatpush1.msra.mxu0 %v854
    %1202 = vmatprep.subr.mxu0 0.0
    %1203 = vmatpush2.msra.mxu0 0.0
    %1204 = vmatprep.subr.mxu0 0.0
    %1205 = vmatpush2.msra.mxu0 0.0
    %1206 = vmatprep.subr.mxu0 0.0
    %1207 = vmatpush2.msra.mxu0 0.0
    %1208 = vmatprep.subr.mxu0 0.0
    %1209 = vmatpush2.msra.mxu0 0.0
    %1210 = vmatprep.subr.mxu0 0.0
    %1211 = vmatpush2.msra.mxu0 0.0
    %1212 = vmatprep.subr.mxu0 0.0
    %1213 = vmatpush2.msra.mxu0 0.0
    %1214 = vmatprep.subr.mxu0 0.0
    %1215 = vmatpush2.msra.mxu0 0.0
    %1216 = vmatprep.subr.mxu0 0.0
    %1217 = vmatpush2.msra.mxu0 0.0
    %1218 = vmatprep.subr.mxu0 0.0
    %1219 = vmatpush2.msra.mxu0 0.0
    %1220 = vmatprep.subr.mxu0 0.0
    %1221 = vmatpush2.msra.mxu0 0.0
    %1222 = vmatprep.subr.mxu0 0.0
    %1223 = vmatpush2.msra.mxu0 0.0
    %1224 = vmatprep.subr.mxu0 0.0
    %1225 = vmatpush2.msra.mxu0 0.0
    %1226 = vmatprep.subr.mxu0 0.0
    %1227 = vmatpush2.msra.mxu0 0.0
    %1228 = vmatprep.subr.mxu0 0.0
    %1229 = vmatpush2.msra.mxu0 0.0
    %1230 = vmatprep.subr.mxu0 0.0
    %1231 = vmatpush2.msra.mxu0 0.0
    %1232 = vmatprep.subr.mxu0 0.0
    %1233 = vmatpush2.msra.mxu0 0.0
    %1234 = vmatprep.mubr.f32.mxu0 0.0
    %1235 = vmatmul.mubr.f32.gmra.mxu0 %v1168
    %v1236 = vpop.f32.mrf.mxu0
    %v1237 = vadd.f32 0.0, %v1236
    %v1238 = vpop.f32.mrf.mxu0
    %1239 = vdwg.mxu0
    %v1240 = vadd.f32 %v851, %v1237
    %v1241 = vtanh.pop %v1240
    %v1243 = vsel %vm129, %v1241, 0
    %1245 = vmatprep.subr.mxu0 0.0
    %1246 = vmatpush1.msra.mxu0 0.0
    %1247 = vmatprep.subr.mxu0 0.0
    %1248 = vmatpush1.msra.mxu0 0.0
    %1249 = vmatprep.subr.mxu0 0.0
    %1250 = vmatpush1.msra.mxu0 0.0
    %1251 = vmatprep.subr.mxu0 0.0
    %1252 = vmatpush1.msra.mxu0 0.0
    %1253 = vmatprep.subr.mxu0 0.0
    %1254 = vmatpush1.msra.mxu0 0.0
    %1255 = vmatprep.subr.mxu0 0.0
    %1256 = vmatpush1.msra.mxu0 0.0
    %1257 = vmatprep.subr.mxu0 0.0
    %1258 = vmatpush1.msra.mxu0 0.0
    %1259 = vmatprep.subr.mxu0 0.0
    %1260 = vmatpush1.msra.mxu0 0.0
    %1261 = vmatprep.subr.mxu0 0.0
    %1262 = vmatpush1.msra.mxu0 0.0
    %1263 = vmatprep.subr.mxu0 0.0
    %1264 = vmatpush1.msra.mxu0 0.0
    %1265 = vmatprep.subr.mxu0 0.0
    %1266 = vmatpush1.msra.mxu0 0.0
    %1267 = vmatprep.subr.mxu0 0.0
    %1268 = vmatpush1.msra.mxu0 0.0
    %1269 = vmatprep.subr.mxu0 0.0
    %1270 = vmatpush1.msra.mxu0 %v857
    %1271 = vmatprep.subr.mxu0 0.0
    %1272 = vmatpush1.msra.mxu0 %v856
    %1273 = vmatprep.subr.mxu0 0.0
    %1274 = vmatpush1.msra.mxu0 %v855
    %1275 = vmatprep.subr.mxu0 0.0
    %1276 = vmatpush1.msra.mxu0 %v854
    %1277 = vmatprep.subr.mxu0 0.0
    %1278 = vmatpush2.msra.mxu0 0.0
    %1279 = vmatprep.subr.mxu0 0.0
    %1280 = vmatpush2.msra.mxu0 0.0
    %1281 = vmatprep.subr.mxu0 0.0
    %1282 = vmatpush2.msra.mxu0 0.0
    %1283 = vmatprep.subr.mxu0 0.0
    %1284 = vmatpush2.msra.mxu0 0.0
    %1285 = vmatprep.subr.mxu0 0.0
    %1286 = vmatpush2.msra.mxu0 0.0
    %1287 = vmatprep.subr.mxu0 0.0
    %1288 = vmatpush2.msra.mxu0 0.0
    %1289 = vmatprep.subr.mxu0 0.0
    %1290 = vmatpush2.msra.mxu0 0.0
    %1291 = vmatprep.subr.mxu0 0.0
    %1292 = vmatpush2.msra.mxu0 0.0
    %1293 = vmatprep.subr.mxu0 0.0
    %1294 = vmatpush2.msra.mxu0 0.0
    %1295 = vmatprep.subr.mxu0 0.0
    %1296 = vmatpush2.msra.mxu0 0.0
    %1297 = vmatprep.subr.mxu0 0.0
    %1298 = vmatpush2.msra.mxu0 0.0
    %1299 = vmatprep.subr.mxu0 0.0
    %1300 = vmatpush2.msra.mxu0 0.0
    %1301 = vmatprep.subr.mxu0 0.0
    %1302 = vmatpush2.msra.mxu0 0.0
    %1303 = vmatprep.subr.mxu0 0.0
    %1304 = vmatpush2.msra.mxu0 0.0
    %1305 = vmatprep.subr.mxu0 0.0
    %1306 = vmatpush2.msra.mxu0 0.0
    %1307 = vmatprep.subr.mxu0 0.0
    %1308 = vmatpush2.msra.mxu0 0.0
    %1309 = vmatprep.mubr.f32.mxu0 0.0
    %1310 = vmatmul.mubr.f32.gmra.mxu0 %v1243
    %v1311 = vpop.f32.mrf.mxu0
    %v1312 = vadd.f32 0.0, %v1311
    %v1313 = vpop.f32.mrf.mxu0
    %1314 = vdwg.mxu0
    %v1316 = vrot.slane %v1312, 6
    %v1318 = vadd.f32 %v851, %v1316
    %v1319 = vtanh.pop %v1318
    %v1321 = vrot.slane %v1319, 2
    %v1322 = vsel %vm129, %v1321, 0
    %1324 = vmatprep.subr.mxu0 0.0
    %1325 = vmatpush1.msra.mxu0 0.0
    %1326 = vmatprep.subr.mxu0 0.0
    %1327 = vmatpush1.msra.mxu0 0.0
    %1328 = vmatprep.subr.mxu0 0.0
    %1329 = vmatpush1.msra.mxu0 0.0
    %1330 = vmatprep.subr.mxu0 0.0
    %1331 = vmatpush1.msra.mxu0 0.0
    %1332 = vmatprep.subr.mxu0 0.0
    %1333 = vmatpush1.msra.mxu0 0.0
    %1334 = vmatprep.subr.mxu0 0.0
    %1335 = vmatpush1.msra.mxu0 0.0
    %1336 = vmatprep.subr.mxu0 0.0
    %1337 = vmatpush1.msra.mxu0 0.0
    %1338 = vmatprep.subr.mxu0 0.0
    %1339 = vmatpush1.msra.mxu0 0.0
    %1340 = vmatprep.subr.mxu0 0.0
    %1341 = vmatpush1.msra.mxu0 0.0
    %1342 = vmatprep.subr.mxu0 0.0
    %1343 = vmatpush1.msra.mxu0 0.0
    %1344 = vmatprep.subr.mxu0 0.0
    %1345 = vmatpush1.msra.mxu0 0.0
    %1346 = vmatprep.subr.mxu0 0.0
    %1347 = vmatpush1.msra.mxu0 0.0
    %1348 = vmatprep.subr.mxu0 0.0
    %1349 = vmatpush1.msra.mxu0 %v857
    %1350 = vmatprep.subr.mxu0 0.0
    %1351 = vmatpush1.msra.mxu0 %v856
    %1352 = vmatprep.subr.mxu0 0.0
    %1353 = vmatpush1.msra.mxu0 %v855
    %1354 = vmatprep.subr.mxu0 0.0
    %1355 = vmatpush1.msra.mxu0 %v854
    %1356 = vmatprep.subr.mxu0 0.0
    %1357 = vmatpush2.msra.mxu0 0.0
    %1358 = vmatprep.subr.mxu0 0.0
    %1359 = vmatpush2.msra.mxu0 0.0
    %1360 = vmatprep.subr.mxu0 0.0
    %1361 = vmatpush2.msra.mxu0 0.0
    %1362 = vmatprep.subr.mxu0 0.0
    %1363 = vmatpush2.msra.mxu0 0.0
    %1364 = vmatprep.subr.mxu0 0.0
    %1365 = vmatpush2.msra.mxu0 0.0
    %1366 = vmatprep.subr.mxu0 0.0
    %1367 = vmatpush2.msra.mxu0 0.0
    %1368 = vmatprep.subr.mxu0 0.0
    %1369 = vmatpush2.msra.mxu0 0.0
    %1370 = vmatprep.subr.mxu0 0.0
    %1371 = vmatpush2.msra.mxu0 0.0
    %1372 = vmatprep.subr.mxu0 0.0
    %1373 = vmatpush2.msra.mxu0 0.0
    %1374 = vmatprep.subr.mxu0 0.0
    %1375 = vmatpush2.msra.mxu0 0.0
    %1376 = vmatprep.subr.mxu0 0.0
    %1377 = vmatpush2.msra.mxu0 0.0
    %1378 = vmatprep.subr.mxu0 0.0
    %1379 = vmatpush2.msra.mxu0 0.0
    %1380 = vmatprep.subr.mxu0 0.0
    %1381 = vmatpush2.msra.mxu0 0.0
    %1382 = vmatprep.subr.mxu0 0.0
    %1383 = vmatpush2.msra.mxu0 0.0
    %1384 = vmatprep.subr.mxu0 0.0
    %1385 = vmatpush2.msra.mxu0 0.0
    %1386 = vmatprep.subr.mxu0 0.0
    %1387 = vmatpush2.msra.mxu0 0.0
    %1388 = vmatprep.mubr.f32.mxu0 0.0
    %1389 = vmatmul.mubr.f32.gmra.mxu0 %v1322
    %v1390 = vpop.f32.mrf.mxu0
    %v1391 = vadd.f32 0.0, %v1390
    %v1392 = vpop.f32.mrf.mxu0
    %1393 = vdwg.mxu0
    %v1395 = vrot.slane %v1391, 4
    %v1397 = vadd.f32 %v851, %v1395
    %v1398 = vtanh.pop %v1397
    %v1400 = vrot.slane %v1398, 4
    %v1401 = vsel %vm129, %v1400, 0
    %1403 = vmatprep.subr.mxu0 0.0
    %1404 = vmatpush1.msra.mxu0 0.0
    %1405 = vmatprep.subr.mxu0 0.0
    %1406 = vmatpush1.msra.mxu0 0.0
    %1407 = vmatprep.subr.mxu0 0.0
    %1408 = vmatpush1.msra.mxu0 0.0
    %1409 = vmatprep.subr.mxu0 0.0
    %1410 = vmatpush1.msra.mxu0 0.0
    %1411 = vmatprep.subr.mxu0 0.0
    %1412 = vmatpush1.msra.mxu0 0.0
    %1413 = vmatprep.subr.mxu0 0.0
    %1414 = vmatpush1.msra.mxu0 0.0
    %1415 = vmatprep.subr.mxu0 0.0
    %1416 = vmatpush1.msra.mxu0 0.0
    %1417 = vmatprep.subr.mxu0 0.0
    %1418 = vmatpush1.msra.mxu0 0.0
    %1419 = vmatprep.subr.mxu0 0.0
    %1420 = vmatpush1.msra.mxu0 0.0
    %1421 = vmatprep.subr.mxu0 0.0
    %1422 = vmatpush1.msra.mxu0 0.0
    %1423 = vmatprep.subr.mxu0 0.0
    %1424 = vmatpush1.msra.mxu0 0.0
    %1425 = vmatprep.subr.mxu0 0.0
    %1426 = vmatpush1.msra.mxu0 0.0
    %1427 = vmatprep.subr.mxu0 0.0
    %1428 = vmatpush1.msra.mxu0 %v857
    %1429 = vmatprep.subr.mxu0 0.0
    %1430 = vmatpush1.msra.mxu0 %v856
    %1431 = vmatprep.subr.mxu0 0.0
    %1432 = vmatpush1.msra.mxu0 %v855
    %1433 = vmatprep.subr.mxu0 0.0
    %1434 = vmatpush1.msra.mxu0 %v854
    %1435 = vmatprep.subr.mxu0 0.0
    %1436 = vmatpush2.msra.mxu0 0.0
    %1437 = vmatprep.subr.mxu0 0.0
    %1438 = vmatpush2.msra.mxu0 0.0
    %1439 = vmatprep.subr.mxu0 0.0
    %1440 = vmatpush2.msra.mxu0 0.0
    %1441 = vmatprep.subr.mxu0 0.0
    %1442 = vmatpush2.msra.mxu0 0.0
    %1443 = vmatprep.subr.mxu0 0.0
    %1444 = vmatpush2.msra.mxu0 0.0
    %1445 = vmatprep.subr.mxu0 0.0
    %1446 = vmatpush2.msra.mxu0 0.0
    %1447 = vmatprep.subr.mxu0 0.0
    %1448 = vmatpush2.msra.mxu0 0.0
    %1449 = vmatprep.subr.mxu0 0.0
    %1450 = vmatpush2.msra.mxu0 0.0
    %1451 = vmatprep.subr.mxu0 0.0
    %1452 = vmatpush2.msra.mxu0 0.0
    %1453 = vmatprep.subr.mxu0 0.0
    %1454 = vmatpush2.msra.mxu0 0.0
    %1455 = vmatprep.subr.mxu0 0.0
    %1456 = vmatpush2.msra.mxu0 0.0
    %1457 = vmatprep.subr.mxu0 0.0
    %1458 = vmatpush2.msra.mxu0 0.0
    %1459 = vmatprep.subr.mxu0 0.0
    %1460 = vmatpush2.msra.mxu0 0.0
    %1461 = vmatprep.subr.mxu0 0.0
    %1462 = vmatpush2.msra.mxu0 0.0
    %1463 = vmatprep.subr.mxu0 0.0
    %1464 = vmatpush2.msra.mxu0 0.0
    %1465 = vmatprep.subr.mxu0 0.0
    %1466 = vmatpush2.msra.mxu0 0.0
    %1467 = vmatprep.mubr.f32.mxu0 0.0
    %1468 = vmatmul.mubr.f32.gmra.mxu0 %v1401
    %v1469 = vpop.f32.mrf.mxu0
    %v1470 = vadd.f32 0.0, %v1469
    %v1471 = vpop.f32.mrf.mxu0
    %1472 = vdwg.mxu0
    %v1474 = vrot.slane %v1470, 2
    %v1476 = vadd.f32 %v851, %v1474
    %v1477 = vtanh.pop %v1476
    %v1478 = vld [vmem:[%s7] sm:$0xff]
    %v1479 = vld [vmem:[%s7 + $0x8] sm:$0xff]
    %v1480 = vld [vmem:[%s7 + $0x10] sm:$0xff]
    %v1481 = vld [vmem:[%s7 + $0x18] sm:$0xff]
    %v1482 = vld [vmem:[%s8] sm:$0x1]
    %v1484 = vlaneseq
    %v1485 = vshrl.u32 %v1484, 7
    %v1486 = vsub.s32 0, %v1485
    %v1487 = vrot.slane %v1482, %v1486
    %v1490 = vrot.slane %v1477, 6
    %v1491 = vsel %vm129, %v1490, 0
    %1493 = vmatprep.subr.mxu0 0.0
    %1494 = vmatpush1.msra.mxu0 0.0
    %1495 = vmatprep.subr.mxu0 0.0
    %1496 = vmatpush1.msra.mxu0 0.0
    %1497 = vmatprep.subr.mxu0 0.0
    %1498 = vmatpush1.msra.mxu0 0.0
    %1499 = vmatprep.subr.mxu0 0.0
    %1500 = vmatpush1.msra.mxu0 0.0
    %1501 = vmatprep.subr.mxu0 0.0
    %1502 = vmatpush1.msra.mxu0 0.0
    %1503 = vmatprep.subr.mxu0 0.0
    %1504 = vmatpush1.msra.mxu0 0.0
    %1505 = vmatprep.subr.mxu0 0.0
    %1506 = vmatpush1.msra.mxu0 0.0
    %1507 = vmatprep.subr.mxu0 0.0
    %1508 = vmatpush1.msra.mxu0 0.0
    %1509 = vmatprep.subr.mxu0 0.0
    %1510 = vmatpush1.msra.mxu0 0.0
    %1511 = vmatprep.subr.mxu0 0.0
    %1512 = vmatpush1.msra.mxu0 0.0
    %1513 = vmatprep.subr.mxu0 0.0
    %1514 = vmatpush1.msra.mxu0 0.0
    %1515 = vmatprep.subr.mxu0 0.0
    %1516 = vmatpush1.msra.mxu0 0.0
    %1517 = vmatprep.subr.mxu0 0.0
    %1518 = vmatpush1.msra.mxu0 %v1481
    %1519 = vmatprep.subr.mxu0 0.0
    %1520 = vmatpush1.msra.mxu0 %v1480
    %1521 = vmatprep.subr.mxu0 0.0
    %1522 = vmatpush1.msra.mxu0 %v1479
    %1523 = vmatprep.subr.mxu0 0.0
    %1524 = vmatpush1.msra.mxu0 %v1478
    %1525 = vmatprep.subr.mxu0 0.0
    %1526 = vmatpush2.msra.mxu0 0.0
    %1527 = vmatprep.subr.mxu0 0.0
    %1528 = vmatpush2.msra.mxu0 0.0
    %1529 = vmatprep.subr.mxu0 0.0
    %1530 = vmatpush2.msra.mxu0 0.0
    %1531 = vmatprep.subr.mxu0 0.0
    %1532 = vmatpush2.msra.mxu0 0.0
    %1533 = vmatprep.subr.mxu0 0.0
    %1534 = vmatpush2.msra.mxu0 0.0
    %1535 = vmatprep.subr.mxu0 0.0
    %1536 = vmatpush2.msra.mxu0 0.0
    %1537 = vmatprep.subr.mxu0 0.0
    %1538 = vmatpush2.msra.mxu0 0.0
    %1539 = vmatprep.subr.mxu0 0.0
    %1540 = vmatpush2.msra.mxu0 0.0
    %1541 = vmatprep.subr.mxu0 0.0
    %1542 = vmatpush2.msra.mxu0 0.0
    %1543 = vmatprep.subr.mxu0 0.0
    %1544 = vmatpush2.msra.mxu0 0.0
    %1545 = vmatprep.subr.mxu0 0.0
    %1546 = vmatpush2.msra.mxu0 0.0
    %1547 = vmatprep.subr.mxu0 0.0
    %1548 = vmatpush2.msra.mxu0 0.0
    %1549 = vmatprep.subr.mxu0 0.0
    %1550 = vmatpush2.msra.mxu0 0.0
    %1551 = vmatprep.subr.mxu0 0.0
    %1552 = vmatpush2.msra.mxu0 0.0
    %1553 = vmatprep.subr.mxu0 0.0
    %1554 = vmatpush2.msra.mxu0 0.0
    %1555 = vmatprep.subr.mxu0 0.0
    %1556 = vmatpush2.msra.mxu0 0.0
    %1557 = vmatprep.mubr.f32.mxu0 0.0
    %1558 = vmatmul.mubr.f32.gmra.mxu0 %v1491
    %v1559 = vpop.f32.mrf.mxu0
    %v1560 = vadd.f32 %v1487, %v1559
    %v1561 = vpop.f32.mrf.mxu0
    %1562 = vdwg.mxu0
    %vm1563 = vcmask 25600
    %1564 = vst.msk [vmem:[#allocation2] sm:$0x3] %vm1563, %v1560
    // Predicated region
    $region38: #{sysid_rnn_forward.1} parent=1 // pred_check
      _
    $region39: #{sysid_rnn_forward.1} parent=1 // pred_check_branch
      %1566 = sbr.rel (0) target = $region41
    $region40: #{sysid_rnn_forward.1} parent=1 // pred_region
      %s1568 = ssub.s32 32, 32
      %1569 = vsyncadd [#allocation3], %s1568
      %s1571 = sshll.u32 [#allocation2], 4
      %s1572 = int_to_ptr.vmem [resolvable:$true] %s1571
      %1574 = dma.vmem_to_hbm [thread:$0]  %s1572, 32, %s9, [#allocation3]
    $region41: #{sysid_rnn_forward.1} parent=1 // pred_fallthru
      _
    // Predicated region
    $region42: #{sysid_rnn_forward.1} parent=1 // pred_check
      _
    $region43: #{sysid_rnn_forward.1} parent=1 // pred_check_branch
      %1576 = sbr.rel (0) target = $region45
    $region44: #{sysid_rnn_forward.1} parent=1 // pred_region
      %1577 = dma.done [#allocation3], 32
    $region45: #{sysid_rnn_forward.1} parent=1 // pred_fallthru
      _
    %1578 = vsyncpa [#allocation3], 1

</llo_original>
